<compile_context>
chip_gen: v7x
topology: tpu7x:2x2x1
jax: 0.10.0
libtpu: 0.0.40
codegen_flags: <defaults>
</compile_context>

<pallas_src>
import jax
import jax.numpy as jnp
import numpy as np
from jax import lax
from jax.experimental import pallas as pl
from jax.experimental.pallas import tpu as pltpu

_LANE = 128


def _round_up(x, m):
    return (x + m - 1) // m * m


def _lstm_fc_kernel(x_ref, w_ih_ref, w_hh_ref, b_ref, w_fc_ref, b_fc_ref,
                    v_ref, gates_in_ref):
    """One batch tile: full LSTM recurrence over time + final Linear.

    x_ref        : (T, Bt, D)     time-major input slab for this batch tile
    w_ih_ref     : (D, 4*Hp)      input->gates; gate k lives in cols [k*Hp, k*Hp+H)
    w_hh_ref     : (Hp, 4*Hp)     hidden->gates (padded rows/cols are zero)
    b_ref        : (1, 4*Hp)      b_ih + b_hh (padded cols zero)
    w_fc_ref     : (Hp, Lp)       fc weight (padded rows/cols zero)
    b_fc_ref     : (1, Lp)        fc bias (padded cols zero)
    v_ref        : (Bt, Lp)       output tile (lane-dense)
    gates_in_ref : (T, Bt, 4*Hp)  VMEM scratch for the hoisted input projection
    Gate order (PyTorch): i, f, g, o.
    """
    T, Bt, D = x_ref.shape
    Hp = w_hh_ref.shape[0]

    # Phase 1: hoist the non-recurrent projection out of the serial loop.
    # One MXU matmul with M = T*Bt (bias folded in) instead of T tiny M=Bt ones.
    x_all = x_ref[...].reshape(T * Bt, D)
    gates_in = (jnp.dot(x_all, w_ih_ref[...], preferred_element_type=jnp.float32)
                + b_ref[...])
    gates_in_ref[...] = gates_in.reshape(T, Bt, 4 * Hp)

    w_hh = w_hh_ref[...]

    # Phase 2: serial recurrence. Gate slices start on Hp (=k*128) lane
    # boundaries and are full-lane width -> no cross-lane shuffles.
    # Elementwise gate math stays f32 (v5e has no bf16 VPU/EUP; c/h precision).
    def step(t, carry):
        h, c = carry
        gates = gates_in_ref[t] + jnp.dot(h, w_hh,
                                          preferred_element_type=jnp.float32)
        i = jax.nn.sigmoid(gates[:, 0 * Hp:1 * Hp])
        f = jax.nn.sigmoid(gates[:, 1 * Hp:2 * Hp])
        g = jnp.tanh(gates[:, 2 * Hp:3 * Hp])
        o = jax.nn.sigmoid(gates[:, 3 * Hp:4 * Hp])
        c_new = f * c + i * g
        h_new = o * jnp.tanh(c_new)
        return h_new, c_new

    h0 = jnp.zeros((Bt, Hp), jnp.float32)
    c0 = jnp.zeros((Bt, Hp), jnp.float32)
    # Fully unroll the short fixed time loop: the recurrence is latency-bound
    # and unrolling lets the scheduler overlap step t's tail with step t+1.
    h_final, _ = lax.fori_loop(0, T, step, (h0, c0), unroll=True)

    # Phase 3: final Linear; lane-dense (Bt, Lp) store.
    v_ref[...] = (jnp.dot(h_final, w_fc_ref[...],
                          preferred_element_type=jnp.float32)
                  + b_fc_ref[...])


def prepare_padded_params(params):
    """Zero-pad hidden (H->Hp) and latent (L->Lp) dims to 128-lane multiples,
    relocating each gate's columns to k*Hp so gate slices are lane-aligned."""
    w_ih_t = params["w_ih_t"]    # (D, 4H)
    w_hh_t = params["w_hh_t"]    # (H, 4H)
    b_gates = params["b_gates"]  # (1, 4H)
    w_fc_t = params["w_fc_t"]    # (H, L)
    b_fc = params["b_fc"]        # (1, L)

    H = w_hh_t.shape[0]
    L = w_fc_t.shape[1]
    Hp = _round_up(H, _LANE)
    Lp = _round_up(L, _LANE)

    def pad_gate_cols(w):  # (..., 4H) -> (..., 4Hp): gate k at cols [k*Hp, k*Hp+H)
        parts = []
        for k in range(4):
            g = w[..., k * H:(k + 1) * H]
            parts.append(jnp.pad(g, [(0, 0)] * (w.ndim - 1) + [(0, Hp - H)]))
        return jnp.concatenate(parts, axis=-1)

    return {
        "w_ih_p": pad_gate_cols(w_ih_t),                                  # (D, 4Hp)
        "w_hh_p": pad_gate_cols(jnp.pad(w_hh_t, ((0, Hp - H), (0, 0)))),  # (Hp, 4Hp)
        "b_p": pad_gate_cols(b_gates),                                    # (1, 4Hp)
        "w_fc_p": jnp.pad(w_fc_t, ((0, Hp - H), (0, Lp - L))),            # (Hp, Lp)
        "b_fc_p": jnp.pad(b_fc, ((0, 0), (0, Lp - L))),                   # (1, Lp)
        "H": H, "L": L, "Hp": Hp, "Lp": Lp,
    }


def encoder_es_forward(x, padded, *, b_tile=8):
    """x: (B, T, input_dim) float32 (batch_first, like the PyTorch module)."""
    B, T, D = x.shape
    Hp, Lp, L = padded["Hp"], padded["Lp"], padded["L"]

    # time-major, batch padded to a multiple of the batch tile (sublane-aligned)
    Bp = _round_up(B, b_tile)
    x_tbd = jnp.transpose(x, (1, 0, 2))
    x_tbd = jnp.pad(x_tbd, ((0, 0), (0, Bp - B), (0, 0)))  # (T, Bp, D)

    grid = (Bp // b_tile,)
    # Grid over batch tiles: the recurrence is independent per batch row, so
    # this axis is "parallel" (megacore on v7x) and x is streamed per tile.
    # TODO(synk): for very long sequences on v7x, additionally stream x in
    # time-chunks (memory_space=pl.ANY + manual double-buffered DMA) so VMEM
    # usage is O(chunk) instead of O(T).
    v_pad = pl.pallas_call(
        _lstm_fc_kernel,
        out_shape=jax.ShapeDtypeStruct((Bp, Lp), jnp.float32),
        grid_spec=pltpu.PrefetchScalarGridSpec(
            num_scalar_prefetch=0,
            grid=grid,
            in_specs=[
                pl.BlockSpec((T, b_tile, D), lambda b: (0, b, 0)),
                pl.BlockSpec((D, 4 * Hp), lambda b: (0, 0)),
                pl.BlockSpec((Hp, 4 * Hp), lambda b: (0, 0)),
                pl.BlockSpec((1, 4 * Hp), lambda b: (0, 0)),
                pl.BlockSpec((Hp, Lp), lambda b: (0, 0)),
                pl.BlockSpec((1, Lp), lambda b: (0, 0)),
            ],
            out_specs=pl.BlockSpec((b_tile, Lp), lambda b: (b, 0)),
            scratch_shapes=[pltpu.VMEM((T, b_tile, 4 * Hp), jnp.float32)],
        ),
        compiler_params=pltpu.CompilerParams(
            dimension_semantics=("parallel",)),
    )(x_tbd, padded["w_ih_p"], padded["w_hh_p"], padded["b_p"],
      padded["w_fc_p"], padded["b_fc_p"])

    v = v_pad[:B, :L]
    # v.squeeze() from the PyTorch forward (no-op unless B==1 or L==1)
    return jnp.squeeze(v)


def init_params(key, input_dim, hidden_dim, latent_dim):
    """Deterministic PyTorch-style uniform init (unpadded, transposed layout)."""
    k_lstm = 1.0 / np.sqrt(hidden_dim)
    k_fc = 1.0 / np.sqrt(hidden_dim)
    ks = jax.random.split(key, 6)
    u = lambda k, shape, lim: jax.random.uniform(k, shape, jnp.float32, -lim, lim)

    w_ih = u(ks[0], (4 * hidden_dim, input_dim), k_lstm)   # PyTorch layout
    w_hh = u(ks[1], (4 * hidden_dim, hidden_dim), k_lstm)
    b_ih = u(ks[2], (4 * hidden_dim,), k_lstm)
    b_hh = u(ks[3], (4 * hidden_dim,), k_lstm)
    w_fc = u(ks[4], (latent_dim, hidden_dim), k_fc)
    b_fc = u(ks[5], (latent_dim,), k_fc)

    return {
        "w_ih_t": jnp.asarray(w_ih.T),                   # (D, 4H)
        "w_hh_t": jnp.asarray(w_hh.T),                   # (H, 4H)
        "b_gates": jnp.asarray((b_ih + b_hh)[None, :]),  # (1, 4H)
        "w_fc_t": jnp.asarray(w_fc.T),                   # (H, L)
        "b_fc": jnp.asarray(b_fc[None, :]),              # (1, L)
    }


def _reference_forward(x, params):
    """Pure-JAX reference of the same forward (for correctness check)."""
    B, T, D = x.shape
    H = params["w_hh_t"].shape[0]

    def step(carry, x_t):
        h, c = carry
        gates = x_t @ params["w_ih_t"] + h @ params["w_hh_t"] + params["b_gates"]
        i = jax.nn.sigmoid(gates[:, 0:H])
        f = jax.nn.sigmoid(gates[:, H:2 * H])
        g = jnp.tanh(gates[:, 2 * H:3 * H])
        o = jax.nn.sigmoid(gates[:, 3 * H:4 * H])
        c = f * c + i * g
        h = o * jnp.tanh(c)
        return (h, c), None

    (h, _), _ = lax.scan(step, (jnp.zeros((B, H)), jnp.zeros((B, H))),
                         jnp.transpose(x, (1, 0, 2)))
    v = h @ params["w_fc_t"] + params["b_fc"]
    return jnp.squeeze(v)


if __name__ == "__main__":
    B, T, input_dim, hidden_dim, latent_dim = 2, 8, 4, 32, 16

    key = jax.random.PRNGKey(0)
    kx, kp = jax.random.split(key)
    x = jax.random.normal(kx, (B, T, input_dim), jnp.float32)
    params = init_params(kp, input_dim, hidden_dim, latent_dim)
    padded = prepare_padded_params(params)

    v = encoder_es_forward(x, padded)
    v = jax.block_until_ready(v)

    v_ref = jax.block_until_ready(_reference_forward(x, params))
    assert v.shape == (B, latent_dim)
    np.testing.assert_allclose(np.asarray(v), np.asarray(v_ref),
                               rtol=1e-5, atol=1e-5)

    print("KERNEL_OK")
</pallas_src>

<mosaic_0001>
module attributes {stable_mosaic.version = 11 : i64} {
  func.func @_lstm_fc_kernel(%arg0: i32, %arg1: memref<8x8x4xf32, #tpu.memory_space<vmem>>, %arg2: memref<4x512xf32, #tpu.memory_space<vmem>>, %arg3: memref<128x512xf32, #tpu.memory_space<vmem>>, %arg4: memref<1x512xf32, #tpu.memory_space<vmem>>, %arg5: memref<128x128xf32, #tpu.memory_space<vmem>>, %arg6: memref<1x128xf32, #tpu.memory_space<vmem>>, %arg7: memref<8x128xf32, #tpu.memory_space<vmem>>, %arg8: memref<8x8x512xf32, #tpu.memory_space<vmem>>) attributes {dimension_semantics = [#tpu.dimension_semantics<parallel>], iteration_bounds = array<i64: 1>, scalar_prefetch = 0 : i64, scratch_operands = 1 : i64, tpu.core_type = #tpu.core_type<tc>, window_params = [{transform_indices = @transform_0, window_bounds = array<i64: 8, 8, 4>}, {pipeline_mode = #tpu.pipeline_mode<synchronous>, transform_indices = @transform_1, window_bounds = array<i64: 4, 512>}, {pipeline_mode = #tpu.pipeline_mode<synchronous>, transform_indices = @transform_2, window_bounds = array<i64: 128, 512>}, {pipeline_mode = #tpu.pipeline_mode<synchronous>, transform_indices = @transform_3, window_bounds = array<i64: 1, 512>}, {pipeline_mode = #tpu.pipeline_mode<synchronous>, transform_indices = @transform_4, window_bounds = array<i64: 128, 128>}, {pipeline_mode = #tpu.pipeline_mode<synchronous>, transform_indices = @transform_5, window_bounds = array<i64: 1, 128>}, {transform_indices = @transform_6, window_bounds = array<i64: 8, 128>}]} {
    %c0 = arith.constant 0 : index
    %c0_0 = arith.constant 0 : index
    %c0_1 = arith.constant 0 : index
    %0 = vector.load %arg1[%c0, %c0_0, %c0_1] : memref<8x8x4xf32, #tpu.memory_space<vmem>>, vector<8x8x4xf32>
    %1 = vector.shape_cast %0 : vector<8x8x4xf32> to vector<64x4xf32>
    %c0_2 = arith.constant 0 : index
    %c0_3 = arith.constant 0 : index
    %2 = vector.load %arg2[%c0_2, %c0_3] : memref<4x512xf32, #tpu.memory_space<vmem>>, vector<4x512xf32>
    %cst = arith.constant dense<0.000000e+00> : vector<64x512xf32>
    %3 = tpu.matmul %1, %2, %cst {dimension_numbers = #tpu.dot_dimension_numbers<[1], [0], [0], [1], [0, 0, 1, 1], [], []>} : vector<64x4xf32>, vector<4x512xf32>, vector<64x512xf32> -> vector<64x512xf32>
    %c0_4 = arith.constant 0 : index
    %c0_5 = arith.constant 0 : index
    %4 = vector.load %arg4[%c0_4, %c0_5] : memref<1x512xf32, #tpu.memory_space<vmem>>, vector<1x512xf32>
    %5 = vector.broadcast %4 : vector<1x512xf32> to vector<64x512xf32>
    %6 = arith.addf %3, %5 : vector<64x512xf32>
    %7 = vector.shape_cast %6 : vector<64x512xf32> to vector<8x8x512xf32>
    %c0_6 = arith.constant 0 : index
    %c0_7 = arith.constant 0 : index
    %c0_8 = arith.constant 0 : index
    %8 = vector.load %arg8[%c0_6, %c0_7, %c0_8] : memref<8x8x512xf32, #tpu.memory_space<vmem>>, vector<8x8x512xf32>
    tpu.vector_store %arg8[%c0_6, %c0_7, %c0_8], %7 {strides = array<i32>} : memref<8x8x512xf32, #tpu.memory_space<vmem>>, vector<8x8x512xf32>,
    %c0_9 = arith.constant 0 : index
    %c0_10 = arith.constant 0 : index
    %9 = vector.load %arg3[%c0_9, %c0_10] : memref<128x512xf32, #tpu.memory_space<vmem>>, vector<128x512xf32>
    %cst_11 = arith.constant 0.000000e+00 : f32
    %10 = vector.broadcast %cst_11 : f32 to vector<8x128xf32>
    %cst_12 = arith.constant 0.000000e+00 : f32
    %11 = vector.broadcast %cst_12 : f32 to vector<8x128xf32>
    %c0_i32 = arith.constant 0 : i32
    %12 = arith.index_cast %c0_i32 : i32 to index
    %c0_13 = arith.constant 0 : index
    %c0_14 = arith.constant 0 : index
    %13 = vector.load %arg8[%12, %c0_13, %c0_14] : memref<8x8x512xf32, #tpu.memory_space<vmem>>, vector<1x8x512xf32>
    %14 = vector.shape_cast %13 : vector<1x8x512xf32> to vector<8x512xf32>
    %cst_15 = arith.constant dense<0.000000e+00> : vector<8x512xf32>
    %15 = tpu.matmul %10, %9, %cst_15 {dimension_numbers = #tpu.dot_dimension_numbers<[1], [0], [0], [1], [0, 0, 1, 1], [], []>} : vector<8x128xf32>, vector<128x512xf32>, vector<8x512xf32> -> vector<8x512xf32>
    %16 = arith.addf %14, %15 : vector<8x512xf32>
    %17 = vector.extract_strided_slice %16 {offsets = [0, 0], sizes = [8, 128], strides = [1, 1]} : vector<8x512xf32> to vector<8x128xf32>
    %18 = arith.negf %17 : vector<8x128xf32>
    %19 = math.exp %18 : vector<8x128xf32>
    %cst_16 = arith.constant 1.000000e+00 : f32
    %20 = vector.broadcast %cst_16 : f32 to vector<8x128xf32>
    %21 = arith.addf %20, %19 : vector<8x128xf32>
    %22 = arith.divf %20, %21 : vector<8x128xf32>
    %23 = vector.extract_strided_slice %16 {offsets = [0, 128], sizes = [8, 128], strides = [1, 1]} : vector<8x512xf32> to vector<8x128xf32>
    %24 = arith.negf %23 : vector<8x128xf32>
    %25 = math.exp %24 : vector<8x128xf32>
    %cst_17 = arith.constant 1.000000e+00 : f32
    %26 = vector.broadcast %cst_17 : f32 to vector<8x128xf32>
    %27 = arith.addf %26, %25 : vector<8x128xf32>
    %28 = arith.divf %26, %27 : vector<8x128xf32>
    %29 = vector.extract_strided_slice %16 {offsets = [0, 256], sizes = [8, 128], strides = [1, 1]} : vector<8x512xf32> to vector<8x128xf32>
    %30 = math.tanh %29 : vector<8x128xf32>
    %31 = vector.extract_strided_slice %16 {offsets = [0, 384], sizes = [8, 128], strides = [1, 1]} : vector<8x512xf32> to vector<8x128xf32>
    %32 = arith.negf %31 : vector<8x128xf32>
    %33 = math.exp %32 : vector<8x128xf32>
    %cst_18 = arith.constant 1.000000e+00 : f32
    %34 = vector.broadcast %cst_18 : f32 to vector<8x128xf32>
    %35 = arith.addf %34, %33 : vector<8x128xf32>
    %36 = arith.divf %34, %35 : vector<8x128xf32>
    %37 = arith.mulf %28, %11 : vector<8x128xf32>
    %38 = arith.mulf %22, %30 : vector<8x128xf32>
    %39 = arith.addf %37, %38 : vector<8x128xf32>
    %40 = math.tanh %39 : vector<8x128xf32>
    %41 = arith.mulf %36, %40 : vector<8x128xf32>
    %c1_i32 = arith.constant 1 : i32
    %42 = arith.index_cast %c1_i32 : i32 to index
    %c0_19 = arith.constant 0 : index
    %c0_20 = arith.constant 0 : index
    %43 = vector.load %arg8[%42, %c0_19, %c0_20] : memref<8x8x512xf32, #tpu.memory_space<vmem>>, vector<1x8x512xf32>
    %44 = vector.shape_cast %43 : vector<1x8x512xf32> to vector<8x512xf32>
    %cst_21 = arith.constant dense<0.000000e+00> : vector<8x512xf32>
    %45 = tpu.matmul %41, %9, %cst_21 {dimension_numbers = #tpu.dot_dimension_numbers<[1], [0], [0], [1], [0, 0, 1, 1], [], []>} : vector<8x128xf32>, vector<128x512xf32>, vector<8x512xf32> -> vector<8x512xf32>
    %46 = arith.addf %44, %45 : vector<8x512xf32>
    %47 = vector.extract_strided_slice %46 {offsets = [0, 0], sizes = [8, 128], strides = [1, 1]} : vector<8x512xf32> to vector<8x128xf32>
    %48 = arith.negf %47 : vector<8x128xf32>
    %49 = math.exp %48 : vector<8x128xf32>
    %cst_22 = arith.constant 1.000000e+00 : f32
    %50 = vector.broadcast %cst_22 : f32 to vector<8x128xf32>
    %51 = arith.addf %50, %49 : vector<8x128xf32>
    %52 = arith.divf %50, %51 : vector<8x128xf32>
    %53 = vector.extract_strided_slice %46 {offsets = [0, 128], sizes = [8, 128], strides = [1, 1]} : vector<8x512xf32> to vector<8x128xf32>
    %54 = arith.negf %53 : vector<8x128xf32>
    %55 = math.exp %54 : vector<8x128xf32>
    %cst_23 = arith.constant 1.000000e+00 : f32
    %56 = vector.broadcast %cst_23 : f32 to vector<8x128xf32>
    %57 = arith.addf %56, %55 : vector<8x128xf32>
    %58 = arith.divf %56, %57 : vector<8x128xf32>
    %59 = vector.extract_strided_slice %46 {offsets = [0, 256], sizes = [8, 128], strides = [1, 1]} : vector<8x512xf32> to vector<8x128xf32>
    %60 = math.tanh %59 : vector<8x128xf32>
    %61 = vector.extract_strided_slice %46 {offsets = [0, 384], sizes = [8, 128], strides = [1, 1]} : vector<8x512xf32> to vector<8x128xf32>
    %62 = arith.negf %61 : vector<8x128xf32>
    %63 = math.exp %62 : vector<8x128xf32>
    %cst_24 = arith.constant 1.000000e+00 : f32
    %64 = vector.broadcast %cst_24 : f32 to vector<8x128xf32>
    %65 = arith.addf %64, %63 : vector<8x128xf32>
    %66 = arith.divf %64, %65 : vector<8x128xf32>
    %67 = arith.mulf %58, %39 : vector<8x128xf32>
    %68 = arith.mulf %52, %60 : vector<8x128xf32>
    %69 = arith.addf %67, %68 : vector<8x128xf32>
    %70 = math.tanh %69 : vector<8x128xf32>
    %71 = arith.mulf %66, %70 : vector<8x128xf32>
    %c2_i32 = arith.constant 2 : i32
    %72 = arith.index_cast %c2_i32 : i32 to index
    %c0_25 = arith.constant 0 : index
    %c0_26 = arith.constant 0 : index
    %73 = vector.load %arg8[%72, %c0_25, %c0_26] : memref<8x8x512xf32, #tpu.memory_space<vmem>>, vector<1x8x512xf32>
    %74 = vector.shape_cast %73 : vector<1x8x512xf32> to vector<8x512xf32>
    %cst_27 = arith.constant dense<0.000000e+00> : vector<8x512xf32>
    %75 = tpu.matmul %71, %9, %cst_27 {dimension_numbers = #tpu.dot_dimension_numbers<[1], [0], [0], [1], [0, 0, 1, 1], [], []>} : vector<8x128xf32>, vector<128x512xf32>, vector<8x512xf32> -> vector<8x512xf32>
    %76 = arith.addf %74, %75 : vector<8x512xf32>
    %77 = vector.extract_strided_slice %76 {offsets = [0, 0], sizes = [8, 128], strides = [1, 1]} : vector<8x512xf32> to vector<8x128xf32>
    %78 = arith.negf %77 : vector<8x128xf32>
    %79 = math.exp %78 : vector<8x128xf32>
    %cst_28 = arith.constant 1.000000e+00 : f32
    %80 = vector.broadcast %cst_28 : f32 to vector<8x128xf32>
    %81 = arith.addf %80, %79 : vector<8x128xf32>
    %82 = arith.divf %80, %81 : vector<8x128xf32>
    %83 = vector.extract_strided_slice %76 {offsets = [0, 128], sizes = [8, 128], strides = [1, 1]} : vector<8x512xf32> to vector<8x128xf32>
    %84 = arith.negf %83 : vector<8x128xf32>
    %85 = math.exp %84 : vector<8x128xf32>
    %cst_29 = arith.constant 1.000000e+00 : f32
    %86 = vector.broadcast %cst_29 : f32 to vector<8x128xf32>
    %87 = arith.addf %86, %85 : vector<8x128xf32>
    %88 = arith.divf %86, %87 : vector<8x128xf32>
    %89 = vector.extract_strided_slice %76 {offsets = [0, 256], sizes = [8, 128], strides = [1, 1]} : vector<8x512xf32> to vector<8x128xf32>
    %90 = math.tanh %89 : vector<8x128xf32>
    %91 = vector.extract_strided_slice %76 {offsets = [0, 384], sizes = [8, 128], strides = [1, 1]} : vector<8x512xf32> to vector<8x128xf32>
    %92 = arith.negf %91 : vector<8x128xf32>
    %93 = math.exp %92 : vector<8x128xf32>
    %cst_30 = arith.constant 1.000000e+00 : f32
    %94 = vector.broadcast %cst_30 : f32 to vector<8x128xf32>
    %95 = arith.addf %94, %93 : vector<8x128xf32>
    %96 = arith.divf %94, %95 : vector<8x128xf32>
    %97 = arith.mulf %88, %69 : vector<8x128xf32>
    %98 = arith.mulf %82, %90 : vector<8x128xf32>
    %99 = arith.addf %97, %98 : vector<8x128xf32>
    %100 = math.tanh %99 : vector<8x128xf32>
    %101 = arith.mulf %96, %100 : vector<8x128xf32>
    %c3_i32 = arith.constant 3 : i32
    %102 = arith.index_cast %c3_i32 : i32 to index
    %c0_31 = arith.constant 0 : index
    %c0_32 = arith.constant 0 : index
    %103 = vector.load %arg8[%102, %c0_31, %c0_32] : memref<8x8x512xf32, #tpu.memory_space<vmem>>, vector<1x8x512xf32>
    %104 = vector.shape_cast %103 : vector<1x8x512xf32> to vector<8x512xf32>
    %cst_33 = arith.constant dense<0.000000e+00> : vector<8x512xf32>
    %105 = tpu.matmul %101, %9, %cst_33 {dimension_numbers = #tpu.dot_dimension_numbers<[1], [0], [0], [1], [0, 0, 1, 1], [], []>} : vector<8x128xf32>, vector<128x512xf32>, vector<8x512xf32> -> vector<8x512xf32>
    %106 = arith.addf %104, %105 : vector<8x512xf32>
    %107 = vector.extract_strided_slice %106 {offsets = [0, 0], sizes = [8, 128], strides = [1, 1]} : vector<8x512xf32> to vector<8x128xf32>
    %108 = arith.negf %107 : vector<8x128xf32>
    %109 = math.exp %108 : vector<8x128xf32>
    %cst_34 = arith.constant 1.000000e+00 : f32
    %110 = vector.broadcast %cst_34 : f32 to vector<8x128xf32>
    %111 = arith.addf %110, %109 : vector<8x128xf32>
    %112 = arith.divf %110, %111 : vector<8x128xf32>
    %113 = vector.extract_strided_slice %106 {offsets = [0, 128], sizes = [8, 128], strides = [1, 1]} : vector<8x512xf32> to vector<8x128xf32>
    %114 = arith.negf %113 : vector<8x128xf32>
    %115 = math.exp %114 : vector<8x128xf32>
    %cst_35 = arith.constant 1.000000e+00 : f32
    %116 = vector.broadcast %cst_35 : f32 to vector<8x128xf32>
    %117 = arith.addf %116, %115 : vector<8x128xf32>
    %118 = arith.divf %116, %117 : vector<8x128xf32>
    %119 = vector.extract_strided_slice %106 {offsets = [0, 256], sizes = [8, 128], strides = [1, 1]} : vector<8x512xf32> to vector<8x128xf32>
    %120 = math.tanh %119 : vector<8x128xf32>
    %121 = vector.extract_strided_slice %106 {offsets = [0, 384], sizes = [8, 128], strides = [1, 1]} : vector<8x512xf32> to vector<8x128xf32>
    %122 = arith.negf %121 : vector<8x128xf32>
    %123 = math.exp %122 : vector<8x128xf32>
    %cst_36 = arith.constant 1.000000e+00 : f32
    %124 = vector.broadcast %cst_36 : f32 to vector<8x128xf32>
    %125 = arith.addf %124, %123 : vector<8x128xf32>
    %126 = arith.divf %124, %125 : vector<8x128xf32>
    %127 = arith.mulf %118, %99 : vector<8x128xf32>
    %128 = arith.mulf %112, %120 : vector<8x128xf32>
    %129 = arith.addf %127, %128 : vector<8x128xf32>
    %130 = math.tanh %129 : vector<8x128xf32>
    %131 = arith.mulf %126, %130 : vector<8x128xf32>
    %c4_i32 = arith.constant 4 : i32
    %132 = arith.index_cast %c4_i32 : i32 to index
    %c0_37 = arith.constant 0 : index
    %c0_38 = arith.constant 0 : index
    %133 = vector.load %arg8[%132, %c0_37, %c0_38] : memref<8x8x512xf32, #tpu.memory_space<vmem>>, vector<1x8x512xf32>
    %134 = vector.shape_cast %133 : vector<1x8x512xf32> to vector<8x512xf32>
    %cst_39 = arith.constant dense<0.000000e+00> : vector<8x512xf32>
    %135 = tpu.matmul %131, %9, %cst_39 {dimension_numbers = #tpu.dot_dimension_numbers<[1], [0], [0], [1], [0, 0, 1, 1], [], []>} : vector<8x128xf32>, vector<128x512xf32>, vector<8x512xf32> -> vector<8x512xf32>
    %136 = arith.addf %134, %135 : vector<8x512xf32>
    %137 = vector.extract_strided_slice %136 {offsets = [0, 0], sizes = [8, 128], strides = [1, 1]} : vector<8x512xf32> to vector<8x128xf32>
    %138 = arith.negf %137 : vector<8x128xf32>
    %139 = math.exp %138 : vector<8x128xf32>
    %cst_40 = arith.constant 1.000000e+00 : f32
    %140 = vector.broadcast %cst_40 : f32 to vector<8x128xf32>
    %141 = arith.addf %140, %139 : vector<8x128xf32>
    %142 = arith.divf %140, %141 : vector<8x128xf32>
    %143 = vector.extract_strided_slice %136 {offsets = [0, 128], sizes = [8, 128], strides = [1, 1]} : vector<8x512xf32> to vector<8x128xf32>
    %144 = arith.negf %143 : vector<8x128xf32>
    %145 = math.exp %144 : vector<8x128xf32>
    %cst_41 = arith.constant 1.000000e+00 : f32
    %146 = vector.broadcast %cst_41 : f32 to vector<8x128xf32>
    %147 = arith.addf %146, %145 : vector<8x128xf32>
    %148 = arith.divf %146, %147 : vector<8x128xf32>
    %149 = vector.extract_strided_slice %136 {offsets = [0, 256], sizes = [8, 128], strides = [1, 1]} : vector<8x512xf32> to vector<8x128xf32>
    %150 = math.tanh %149 : vector<8x128xf32>
    %151 = vector.extract_strided_slice %136 {offsets = [0, 384], sizes = [8, 128], strides = [1, 1]} : vector<8x512xf32> to vector<8x128xf32>
    %152 = arith.negf %151 : vector<8x128xf32>
    %153 = math.exp %152 : vector<8x128xf32>
    %cst_42 = arith.constant 1.000000e+00 : f32
    %154 = vector.broadcast %cst_42 : f32 to vector<8x128xf32>
    %155 = arith.addf %154, %153 : vector<8x128xf32>
    %156 = arith.divf %154, %155 : vector<8x128xf32>
    %157 = arith.mulf %148, %129 : vector<8x128xf32>
    %158 = arith.mulf %142, %150 : vector<8x128xf32>
    %159 = arith.addf %157, %158 : vector<8x128xf32>
    %160 = math.tanh %159 : vector<8x128xf32>
    %161 = arith.mulf %156, %160 : vector<8x128xf32>
    %c5_i32 = arith.constant 5 : i32
    %162 = arith.index_cast %c5_i32 : i32 to index
    %c0_43 = arith.constant 0 : index
    %c0_44 = arith.constant 0 : index
    %163 = vector.load %arg8[%162, %c0_43, %c0_44] : memref<8x8x512xf32, #tpu.memory_space<vmem>>, vector<1x8x512xf32>
    %164 = vector.shape_cast %163 : vector<1x8x512xf32> to vector<8x512xf32>
    %cst_45 = arith.constant dense<0.000000e+00> : vector<8x512xf32>
    %165 = tpu.matmul %161, %9, %cst_45 {dimension_numbers = #tpu.dot_dimension_numbers<[1], [0], [0], [1], [0, 0, 1, 1], [], []>} : vector<8x128xf32>, vector<128x512xf32>, vector<8x512xf32> -> vector<8x512xf32>
    %166 = arith.addf %164, %165 : vector<8x512xf32>
    %167 = vector.extract_strided_slice %166 {offsets = [0, 0], sizes = [8, 128], strides = [1, 1]} : vector<8x512xf32> to vector<8x128xf32>
    %168 = arith.negf %167 : vector<8x128xf32>
    %169 = math.exp %168 : vector<8x128xf32>
    %cst_46 = arith.constant 1.000000e+00 : f32
    %170 = vector.broadcast %cst_46 : f32 to vector<8x128xf32>
    %171 = arith.addf %170, %169 : vector<8x128xf32>
    %172 = arith.divf %170, %171 : vector<8x128xf32>
    %173 = vector.extract_strided_slice %166 {offsets = [0, 128], sizes = [8, 128], strides = [1, 1]} : vector<8x512xf32> to vector<8x128xf32>
    %174 = arith.negf %173 : vector<8x128xf32>
    %175 = math.exp %174 : vector<8x128xf32>
    %cst_47 = arith.constant 1.000000e+00 : f32
    %176 = vector.broadcast %cst_47 : f32 to vector<8x128xf32>
    %177 = arith.addf %176, %175 : vector<8x128xf32>
    %178 = arith.divf %176, %177 : vector<8x128xf32>
    %179 = vector.extract_strided_slice %166 {offsets = [0, 256], sizes = [8, 128], strides = [1, 1]} : vector<8x512xf32> to vector<8x128xf32>
    %180 = math.tanh %179 : vector<8x128xf32>
    %181 = vector.extract_strided_slice %166 {offsets = [0, 384], sizes = [8, 128], strides = [1, 1]} : vector<8x512xf32> to vector<8x128xf32>
    %182 = arith.negf %181 : vector<8x128xf32>
    %183 = math.exp %182 : vector<8x128xf32>
    %cst_48 = arith.constant 1.000000e+00 : f32
    %184 = vector.broadcast %cst_48 : f32 to vector<8x128xf32>
    %185 = arith.addf %184, %183 : vector<8x128xf32>
    %186 = arith.divf %184, %185 : vector<8x128xf32>
    %187 = arith.mulf %178, %159 : vector<8x128xf32>
    %188 = arith.mulf %172, %180 : vector<8x128xf32>
    %189 = arith.addf %187, %188 : vector<8x128xf32>
    %190 = math.tanh %189 : vector<8x128xf32>
    %191 = arith.mulf %186, %190 : vector<8x128xf32>
    %c6_i32 = arith.constant 6 : i32
    %192 = arith.index_cast %c6_i32 : i32 to index
    %c0_49 = arith.constant 0 : index
    %c0_50 = arith.constant 0 : index
    %193 = vector.load %arg8[%192, %c0_49, %c0_50] : memref<8x8x512xf32, #tpu.memory_space<vmem>>, vector<1x8x512xf32>
    %194 = vector.shape_cast %193 : vector<1x8x512xf32> to vector<8x512xf32>
    %cst_51 = arith.constant dense<0.000000e+00> : vector<8x512xf32>
    %195 = tpu.matmul %191, %9, %cst_51 {dimension_numbers = #tpu.dot_dimension_numbers<[1], [0], [0], [1], [0, 0, 1, 1], [], []>} : vector<8x128xf32>, vector<128x512xf32>, vector<8x512xf32> -> vector<8x512xf32>
    %196 = arith.addf %194, %195 : vector<8x512xf32>
    %197 = vector.extract_strided_slice %196 {offsets = [0, 0], sizes = [8, 128], strides = [1, 1]} : vector<8x512xf32> to vector<8x128xf32>
    %198 = arith.negf %197 : vector<8x128xf32>
    %199 = math.exp %198 : vector<8x128xf32>
    %cst_52 = arith.constant 1.000000e+00 : f32
    %200 = vector.broadcast %cst_52 : f32 to vector<8x128xf32>
    %201 = arith.addf %200, %199 : vector<8x128xf32>
    %202 = arith.divf %200, %201 : vector<8x128xf32>
    %203 = vector.extract_strided_slice %196 {offsets = [0, 128], sizes = [8, 128], strides = [1, 1]} : vector<8x512xf32> to vector<8x128xf32>
    %204 = arith.negf %203 : vector<8x128xf32>
    %205 = math.exp %204 : vector<8x128xf32>
    %cst_53 = arith.constant 1.000000e+00 : f32
    %206 = vector.broadcast %cst_53 : f32 to vector<8x128xf32>
    %207 = arith.addf %206, %205 : vector<8x128xf32>
    %208 = arith.divf %206, %207 : vector<8x128xf32>
    %209 = vector.extract_strided_slice %196 {offsets = [0, 256], sizes = [8, 128], strides = [1, 1]} : vector<8x512xf32> to vector<8x128xf32>
    %210 = math.tanh %209 : vector<8x128xf32>
    %211 = vector.extract_strided_slice %196 {offsets = [0, 384], sizes = [8, 128], strides = [1, 1]} : vector<8x512xf32> to vector<8x128xf32>
    %212 = arith.negf %211 : vector<8x128xf32>
    %213 = math.exp %212 : vector<8x128xf32>
    %cst_54 = arith.constant 1.000000e+00 : f32
    %214 = vector.broadcast %cst_54 : f32 to vector<8x128xf32>
    %215 = arith.addf %214, %213 : vector<8x128xf32>
    %216 = arith.divf %214, %215 : vector<8x128xf32>
    %217 = arith.mulf %208, %189 : vector<8x128xf32>
    %218 = arith.mulf %202, %210 : vector<8x128xf32>
    %219 = arith.addf %217, %218 : vector<8x128xf32>
    %220 = math.tanh %219 : vector<8x128xf32>
    %221 = arith.mulf %216, %220 : vector<8x128xf32>
    %c7_i32 = arith.constant 7 : i32
    %222 = arith.index_cast %c7_i32 : i32 to index
    %c0_55 = arith.constant 0 : index
    %c0_56 = arith.constant 0 : index
    %223 = vector.load %arg8[%222, %c0_55, %c0_56] : memref<8x8x512xf32, #tpu.memory_space<vmem>>, vector<1x8x512xf32>
    %224 = vector.shape_cast %223 : vector<1x8x512xf32> to vector<8x512xf32>
    %cst_57 = arith.constant dense<0.000000e+00> : vector<8x512xf32>
    %225 = tpu.matmul %221, %9, %cst_57 {dimension_numbers = #tpu.dot_dimension_numbers<[1], [0], [0], [1], [0, 0, 1, 1], [], []>} : vector<8x128xf32>, vector<128x512xf32>, vector<8x512xf32> -> vector<8x512xf32>
    %226 = arith.addf %224, %225 : vector<8x512xf32>
    %227 = vector.extract_strided_slice %226 {offsets = [0, 0], sizes = [8, 128], strides = [1, 1]} : vector<8x512xf32> to vector<8x128xf32>
    %228 = arith.negf %227 : vector<8x128xf32>
    %229 = math.exp %228 : vector<8x128xf32>
    %cst_58 = arith.constant 1.000000e+00 : f32
    %230 = vector.broadcast %cst_58 : f32 to vector<8x128xf32>
    %231 = arith.addf %230, %229 : vector<8x128xf32>
    %232 = arith.divf %230, %231 : vector<8x128xf32>
    %233 = vector.extract_strided_slice %226 {offsets = [0, 128], sizes = [8, 128], strides = [1, 1]} : vector<8x512xf32> to vector<8x128xf32>
    %234 = arith.negf %233 : vector<8x128xf32>
    %235 = math.exp %234 : vector<8x128xf32>
    %cst_59 = arith.constant 1.000000e+00 : f32
    %236 = vector.broadcast %cst_59 : f32 to vector<8x128xf32>
    %237 = arith.addf %236, %235 : vector<8x128xf32>
    %238 = arith.divf %236, %237 : vector<8x128xf32>
    %239 = vector.extract_strided_slice %226 {offsets = [0, 256], sizes = [8, 128], strides = [1, 1]} : vector<8x512xf32> to vector<8x128xf32>
    %240 = math.tanh %239 : vector<8x128xf32>
    %241 = vector.extract_strided_slice %226 {offsets = [0, 384], sizes = [8, 128], strides = [1, 1]} : vector<8x512xf32> to vector<8x128xf32>
    %242 = arith.negf %241 : vector<8x128xf32>
    %243 = math.exp %242 : vector<8x128xf32>
    %cst_60 = arith.constant 1.000000e+00 : f32
    %244 = vector.broadcast %cst_60 : f32 to vector<8x128xf32>
    %245 = arith.addf %244, %243 : vector<8x128xf32>
    %246 = arith.divf %244, %245 : vector<8x128xf32>
    %247 = arith.mulf %238, %219 : vector<8x128xf32>
    %248 = arith.mulf %232, %240 : vector<8x128xf32>
    %249 = arith.addf %247, %248 : vector<8x128xf32>
    %250 = math.tanh %249 : vector<8x128xf32>
    %251 = arith.mulf %246, %250 : vector<8x128xf32>
    %c8_i32 = arith.constant 8 : i32
    %c0_61 = arith.constant 0 : index
    %c0_62 = arith.constant 0 : index
    %252 = vector.load %arg5[%c0_61, %c0_62] : memref<128x128xf32, #tpu.memory_space<vmem>>, vector<128x128xf32>
    %cst_63 = arith.constant dense<0.000000e+00> : vector<8x128xf32>
    %253 = tpu.matmul %251, %252, %cst_63 {dimension_numbers = #tpu.dot_dimension_numbers<[1], [0], [0], [1], [0, 0, 1, 1], [], []>} : vector<8x128xf32>, vector<128x128xf32>, vector<8x128xf32> -> vector<8x128xf32>
    %c0_64 = arith.constant 0 : index
    %c0_65 = arith.constant 0 : index
    %254 = vector.load %arg6[%c0_64, %c0_65] : memref<1x128xf32, #tpu.memory_space<vmem>>, vector<1x128xf32>
    %255 = vector.broadcast %254 : vector<1x128xf32> to vector<8x128xf32>
    %256 = arith.addf %253, %255 : vector<8x128xf32>
    %c0_66 = arith.constant 0 : index
    %c0_67 = arith.constant 0 : index
    %257 = vector.load %arg7[%c0_66, %c0_67] : memref<8x128xf32, #tpu.memory_space<vmem>>, vector<8x128xf32>
    tpu.vector_store %arg7[%c0_66, %c0_67], %256 {strides = array<i32>} : memref<8x128xf32, #tpu.memory_space<vmem>>, vector<8x128xf32>,
    return
  }
  func.func @transform_0(%arg0: i32) -> (i32, i32, i32) {
    %c0_i32 = arith.constant 0 : i32
    %c0_i32_0 = arith.constant 0 : i32
    %c0_i32_1 = arith.constant 0 : i32
    return %c0_i32, %arg0, %c0_i32_0 : i32, i32, i32
  }
  func.func @transform_1(%arg0: i32) -> (i32, i32) {
    %c0_i32 = arith.constant 0 : i32
    %c0_i32_0 = arith.constant 0 : i32
    %c0_i32_1 = arith.constant 0 : i32
    return %c0_i32, %c0_i32_0 : i32, i32
  }
  func.func @transform_2(%arg0: i32) -> (i32, i32) {
    %c0_i32 = arith.constant 0 : i32
    %c0_i32_0 = arith.constant 0 : i32
    %c0_i32_1 = arith.constant 0 : i32
    return %c0_i32, %c0_i32_0 : i32, i32
  }
  func.func @transform_3(%arg0: i32) -> (i32, i32) {
    %c0_i32 = arith.constant 0 : i32
    %c0_i32_0 = arith.constant 0 : i32
    %c0_i32_1 = arith.constant 0 : i32
    return %c0_i32, %c0_i32_0 : i32, i32
  }
  func.func @transform_4(%arg0: i32) -> (i32, i32) {
    %c0_i32 = arith.constant 0 : i32
    %c0_i32_0 = arith.constant 0 : i32
    %c0_i32_1 = arith.constant 0 : i32
    return %c0_i32, %c0_i32_0 : i32, i32
  }
  func.func @transform_5(%arg0: i32) -> (i32, i32) {
    %c0_i32 = arith.constant 0 : i32
    %c0_i32_0 = arith.constant 0 : i32
    %c0_i32_1 = arith.constant 0 : i32
    return %c0_i32, %c0_i32_0 : i32, i32
  }
  func.func @transform_6(%arg0: i32) -> (i32, i32) {
    %c0_i32 = arith.constant 0 : i32
    %c0_i32_0 = arith.constant 0 : i32
    return %arg0, %c0_i32 : i32, i32
  }
}

</mosaic_0001>

<llo_original>
// kernel: tpu_custom_call.1
$region0: #{tpu_custom_call.1}
  #allocation0 [shape = 'u32[]', space=smem, size = 0x4, offset = 0x4, fixed_abs, tag = 'smem constant byte address 0x4 - core index']
  #allocation1 [shape = 'u32[144,128]{1,0:T(1,128)}', space=vmem, size = 0x12000, scoped, tag = 'internal scratch']
  #allocation2 [shape = 'f32[8,8,512]{2,1,0:T(8,128)}', space=vmem, size = 0x20000, scoped, tag = 'scratch operand']
  %s0 = inlined_call_operand.vmem [shape: f32[8,8,4], index: 0, kind: input, shape index: {}]
  %s1 = inlined_call_operand.vmem [shape: f32[4,512], index: 1, kind: input, shape index: {}]
  %s2 = inlined_call_operand.hbm [shape: f32[128,512], index: 2, kind: input, shape index: {}]
  %s3 = inlined_call_operand.vmem [shape: f32[1,512], index: 3, kind: input, shape index: {}]
  %s4 = inlined_call_operand.hbm [shape: f32[128,128], index: 4, kind: input, shape index: {}]
  %s5 = inlined_call_operand.vmem [shape: f32[1,128], index: 5, kind: input, shape index: {}]
  %s6 = inlined_call_operand.hbm [shape: f32[8,128], index: 6, kind: output, shape index: {}]
  %s7 = sld [smem:[#allocation0]]
  $region42: #{tpu_custom_call.1} parent=0
    _
  %s9 = ssub.s32 1, %s7
  %s10 = scalar_select 0, %s9, %s7
  $region1: #{tpu_custom_call.1} parent=0
    #allocation3 [shape = 'u8[262144]{0}', space=vmem, size = 0x40000, scoped, tag = 'input window, operand 2, single buffered']
    #allocation4 [shape = 's32[1]{0}', space=sflag, size = 0x4, scoped, tag = 'scoped memory for tpu_custom_call.1']
    #allocation5 [shape = 's32[1]{0}', space=sflag, size = 0x4, scoped, tag = 'scoped memory for tpu_custom_call.1']
    #allocation6 [shape = 'u8[65536]{0}', space=vmem, size = 0x10000, scoped, tag = 'input window, operand 4, single buffered']
    #allocation7 [shape = 's32[1]{0}', space=sflag, size = 0x4, scoped, tag = 'scoped memory for tpu_custom_call.1']
    #allocation8 [shape = 'u8[4096]{0}', space=vmem, size = 0x1000, scoped, tag = 'output window, operand 0, single buffered']
    %11 = vsyncpa [#allocation4], 0
    %12 = vsyncpa [#allocation7], 0
    %13 = vsyncpa [#allocation5], 0
    // Predicated region
    $region2: #{tpu_custom_call.1} parent=1 // pred_check
      _
    $region3: #{tpu_custom_call.1} parent=1 // pred_check_branch
      %15 = sbr.rel (0) target = $region5
    $region4: #{tpu_custom_call.1} parent=1 // pred_region
      _
    $region5: #{tpu_custom_call.1} parent=1 // pred_fallthru
      _
    // Predicated region
    $region6: #{tpu_custom_call.1} parent=1 // pred_check
      _
    $region7: #{tpu_custom_call.1} parent=1 // pred_check_branch
      %17 = sbr.rel (0) target = $region9
    $region8: #{tpu_custom_call.1} parent=1 // pred_region
      _
    $region9: #{tpu_custom_call.1} parent=1 // pred_fallthru
      _
    // Predicated region
    $region10: #{tpu_custom_call.1} parent=1 // pred_check
      _
    $region11: #{tpu_custom_call.1} parent=1 // pred_check_branch
      %19 = sbr.rel (0) target = $region13
    $region12: #{tpu_custom_call.1} parent=1 // pred_region
      %s21 = ssub.s32 8192, 8192
      %22 = vsyncadd [#allocation4], %s21
      %s23 = sshll.u32 [#allocation3], 4
      %s24 = int_to_ptr.vmem [resolvable:$true] %s23
      %29 = dma.hbm_to_vmem [thread:$0]  %s2, 8192, %s24, [#allocation4], 512, 512, 32
    $region13: #{tpu_custom_call.1} parent=1 // pred_fallthru
      _
    // Predicated region
    $region14: #{tpu_custom_call.1} parent=1 // pred_check
      _
    $region15: #{tpu_custom_call.1} parent=1 // pred_check_branch
      %31 = sbr.rel (0) target = $region17
    $region16: #{tpu_custom_call.1} parent=1 // pred_region
      _
    $region17: #{tpu_custom_call.1} parent=1 // pred_fallthru
      _
    // Predicated region
    $region18: #{tpu_custom_call.1} parent=1 // pred_check
      _
    $region19: #{tpu_custom_call.1} parent=1 // pred_check_branch
      %33 = sbr.rel (0) target = $region21
    $region20: #{tpu_custom_call.1} parent=1 // pred_region
      %s35 = ssub.s32 2048, 2048
      %36 = vsyncadd [#allocation7], %s35
      %s37 = sshll.u32 [#allocation6], 4
      %s38 = int_to_ptr.vmem [resolvable:$true] %s37
      %43 = dma.hbm_to_vmem [thread:$0]  %s4, 2048, %s38, [#allocation7], 128, 128, 8
    $region21: #{tpu_custom_call.1} parent=1 // pred_fallthru
      _
    // Predicated region
    $region22: #{tpu_custom_call.1} parent=1 // pred_check
      _
    $region23: #{tpu_custom_call.1} parent=1 // pred_check_branch
      %45 = sbr.rel (0) target = $region25
    $region24: #{tpu_custom_call.1} parent=1 // pred_region
      _
    $region25: #{tpu_custom_call.1} parent=1 // pred_fallthru
      _
    // Predicated region
    $region26: #{tpu_custom_call.1} parent=1 // pred_check
      _
    $region27: #{tpu_custom_call.1} parent=1 // pred_check_branch
      %47 = sbr.rel (0) target = $region29
    $region28: #{tpu_custom_call.1} parent=1 // pred_region
      %48 = dma.done [#allocation4], 8192
    $region29: #{tpu_custom_call.1} parent=1 // pred_fallthru
      _
    // Predicated region
    $region30: #{tpu_custom_call.1} parent=1 // pred_check
      _
    $region31: #{tpu_custom_call.1} parent=1 // pred_check_branch
      %50 = sbr.rel (0) target = $region33
    $region32: #{tpu_custom_call.1} parent=1 // pred_region
      %51 = dma.done [#allocation7], 2048
    $region33: #{tpu_custom_call.1} parent=1 // pred_fallthru
      _
    %v52 = vld [vmem:[%s0] sm:$0xff]
    %v53 = vld [vmem:[%s0 + $0x8] sm:$0xff]
    %v54 = vld [vmem:[%s0 + $0x10] sm:$0xff]
    %v55 = vld [vmem:[%s0 + $0x18] sm:$0xff]
    %v56 = vld [vmem:[%s0 + $0x20] sm:$0xff]
    %v57 = vld [vmem:[%s0 + $0x28] sm:$0xff]
    %v58 = vld [vmem:[%s0 + $0x30] sm:$0xff]
    %v59 = vld [vmem:[%s0 + $0x38] sm:$0xff]
    %v60 = vld [vmem:[%s1] sm:$0xff]
    %v61 = vld [vmem:[%s1 + $0x8] sm:$0xff]
    %v62 = vld [vmem:[%s3] sm:$0xf]
    %v64 = vlaneseq
    %v65 = vshrl.u32 %v64, 7
    %v66 = vsub.s32 0, %v65
    %v67 = vrot.slane %v62, %v66
    %v68 = vlaneseq
    %v69 = vshrl.u32 %v68, 7
    %v70 = vsub.s32 1, %v69
    %v71 = vrot.slane %v62, %v70
    %v72 = vlaneseq
    %v73 = vshrl.u32 %v72, 7
    %v74 = vsub.s32 2, %v73
    %v75 = vrot.slane %v62, %v74
    %v76 = vlaneseq
    %v77 = vshrl.u32 %v76, 7
    %v78 = vsub.s32 3, %v77
    %v79 = vrot.slane %v62, %v78
    %v86 = vcombine.high %v60, %v60
    %v87 = vcombine.high %v61, %v61
    %vm88 = vcmask 31744
    %v90 = vsel %vm88, %v52, 0
    %v93 = vsel %vm88, %v53, 0
    %v96 = vsel %vm88, %v54, 0
    %v99 = vsel %vm88, %v55, 0
    %v102 = vsel %vm88, %v56, 0
    %v105 = vsel %vm88, %v57, 0
    %v108 = vsel %vm88, %v58, 0
    %v111 = vsel %vm88, %v59, 0
    %vm113 = vcmask 1043456
    %v114 = vsel %vm113, %v60, 0
    %v116 = vsel %vm113, %v86, 0
    %v118 = vsel %vm113, %v61, 0
    %v120 = vsel %vm113, %v87, 0
    %122 = vmatprep.subr.mxu0 %v116
    %123 = vmatpush1.msra.mxu0 %v114
    %124 = vmatprep.subr.mxu0 0.0
    %125 = vmatpush1.msra.mxu0 0.0
    %126 = vmatprep.subr.mxu0 0.0
    %127 = vmatpush1.msra.mxu0 0.0
    %128 = vmatprep.subr.mxu0 0.0
    %129 = vmatpush1.msra.mxu0 0.0
    %130 = vmatprep.subr.mxu0 0.0
    %131 = vmatpush1.msra.mxu0 0.0
    %132 = vmatprep.subr.mxu0 0.0
    %133 = vmatpush1.msra.mxu0 0.0
    %134 = vmatprep.subr.mxu0 0.0
    %135 = vmatpush1.msra.mxu0 0.0
    %136 = vmatprep.subr.mxu0 0.0
    %137 = vmatpush1.msra.mxu0 0.0
    %138 = vmatprep.subr.mxu0 0.0
    %139 = vmatpush1.msra.mxu0 0.0
    %140 = vmatprep.subr.mxu0 0.0
    %141 = vmatpush1.msra.mxu0 0.0
    %142 = vmatprep.subr.mxu0 0.0
    %143 = vmatpush1.msra.mxu0 0.0
    %144 = vmatprep.subr.mxu0 0.0
    %145 = vmatpush1.msra.mxu0 0.0
    %146 = vmatprep.subr.mxu0 0.0
    %147 = vmatpush1.msra.mxu0 0.0
    %148 = vmatprep.subr.mxu0 0.0
    %149 = vmatpush1.msra.mxu0 0.0
    %150 = vmatprep.subr.mxu0 0.0
    %151 = vmatpush1.msra.mxu0 0.0
    %152 = vmatprep.subr.mxu0 0.0
    %153 = vmatpush1.msra.mxu0 0.0
    %154 = vmatprep.subr.mxu0 0.0
    %155 = vmatpush1.msra.mxu0 0.0
    %156 = vmatprep.subr.mxu0 0.0
    %157 = vmatpush1.msra.mxu0 0.0
    %158 = vmatprep.subr.mxu0 0.0
    %159 = vmatpush1.msra.mxu0 0.0
    %160 = vmatprep.subr.mxu0 0.0
    %161 = vmatpush1.msra.mxu0 0.0
    %162 = vmatprep.subr.mxu0 0.0
    %163 = vmatpush1.msra.mxu0 0.0
    %164 = vmatprep.subr.mxu0 0.0
    %165 = vmatpush1.msra.mxu0 0.0
    %166 = vmatprep.subr.mxu0 0.0
    %167 = vmatpush1.msra.mxu0 0.0
    %168 = vmatprep.subr.mxu0 0.0
    %169 = vmatpush1.msra.mxu0 0.0
    %170 = vmatprep.subr.mxu0 0.0
    %171 = vmatpush1.msra.mxu0 0.0
    %172 = vmatprep.subr.mxu0 0.0
    %173 = vmatpush1.msra.mxu0 0.0
    %174 = vmatprep.subr.mxu0 0.0
    %175 = vmatpush1.msra.mxu0 0.0
    %176 = vmatprep.subr.mxu0 0.0
    %177 = vmatpush1.msra.mxu0 0.0
    %178 = vmatprep.subr.mxu0 0.0
    %179 = vmatpush1.msra.mxu0 0.0
    %180 = vmatprep.subr.mxu0 0.0
    %181 = vmatpush1.msra.mxu0 0.0
    %182 = vmatprep.subr.mxu0 0.0
    %183 = vmatpush1.msra.mxu0 0.0
    %184 = vmatprep.subr.mxu0 0.0
    %185 = vmatpush1.msra.mxu0 0.0
    %186 = vmatprep.mubr.f32.mxu0 0.0
    %187 = vmatmul.mubr.f32.gmra.mrb[0].mxu0 %v90
    %v188 = vpop.f32.mrb[0].mxu0
    %v189 = vadd.f32 %v67, %v188
    %v190 = vpop.f32.mrb[0].mxu0
    %v191 = vadd.f32 %v71, %v190
    %192 = vmatprep.mubr.f32.mxu0 0.0
    %193 = vmatmul.mubr.f32.gmra.mrb[0].mxu0 %v93
    %v194 = vpop.f32.mrb[0].mxu0
    %v195 = vadd.f32 %v67, %v194
    %v196 = vpop.f32.mrb[0].mxu0
    %v197 = vadd.f32 %v71, %v196
    %198 = vmatprep.mubr.f32.mxu0 0.0
    %199 = vmatmul.mubr.f32.gmra.mrb[0].mxu0 %v96
    %v200 = vpop.f32.mrb[0].mxu0
    %v201 = vadd.f32 %v67, %v200
    %v202 = vpop.f32.mrb[0].mxu0
    %v203 = vadd.f32 %v71, %v202
    %204 = vmatprep.mubr.f32.mxu0 0.0
    %205 = vmatmul.mubr.f32.gmra.mrb[0].mxu0 %v99
    %v206 = vpop.f32.mrb[0].mxu0
    %v207 = vadd.f32 %v67, %v206
    %v208 = vpop.f32.mrb[0].mxu0
    %v209 = vadd.f32 %v71, %v208
    %210 = vmatprep.mubr.f32.mxu0 0.0
    %211 = vmatmul.mubr.f32.gmra.mrb[0].mxu0 %v102
    %v212 = vpop.f32.mrb[0].mxu0
    %v213 = vadd.f32 %v67, %v212
    %v214 = vpop.f32.mrb[0].mxu0
    %v215 = vadd.f32 %v71, %v214
    %216 = vmatprep.mubr.f32.mxu0 0.0
    %217 = vmatmul.mubr.f32.gmra.mrb[0].mxu0 %v105
    %v218 = vpop.f32.mrb[0].mxu0
    %v219 = vadd.f32 %v67, %v218
    %v220 = vpop.f32.mrb[0].mxu0
    %v221 = vadd.f32 %v71, %v220
    %222 = vmatprep.mubr.f32.mxu0 0.0
    %223 = vmatmul.mubr.f32.gmra.mrb[0].mxu0 %v108
    %v224 = vpop.f32.mrb[0].mxu0
    %v225 = vadd.f32 %v67, %v224
    %v226 = vpop.f32.mrb[0].mxu0
    %v227 = vadd.f32 %v71, %v226
    %228 = vmatprep.mubr.f32.mxu0 0.0
    %229 = vmatmul.mubr.f32.gmra.mrb[0].mxu0 %v111
    %v230 = vpop.f32.mrb[0].mxu0
    %v231 = vadd.f32 %v67, %v230
    %v232 = vpop.f32.mrb[0].mxu0
    %v233 = vadd.f32 %v71, %v232
    %234 = vdwg.mxu0
    %235 = vmatprep.subr.mxu0 %v120
    %236 = vmatpush1.msra.mxu0 %v118
    %237 = vmatprep.subr.mxu0 0.0
    %238 = vmatpush1.msra.mxu0 0.0
    %239 = vmatprep.subr.mxu0 0.0
    %240 = vmatpush1.msra.mxu0 0.0
    %241 = vmatprep.subr.mxu0 0.0
    %242 = vmatpush1.msra.mxu0 0.0
    %243 = vmatprep.subr.mxu0 0.0
    %244 = vmatpush1.msra.mxu0 0.0
    %245 = vmatprep.subr.mxu0 0.0
    %246 = vmatpush1.msra.mxu0 0.0
    %247 = vmatprep.subr.mxu0 0.0
    %248 = vmatpush1.msra.mxu0 0.0
    %249 = vmatprep.subr.mxu0 0.0
    %250 = vmatpush1.msra.mxu0 0.0
    %251 = vmatprep.subr.mxu0 0.0
    %252 = vmatpush1.msra.mxu0 0.0
    %253 = vmatprep.subr.mxu0 0.0
    %254 = vmatpush1.msra.mxu0 0.0
    %255 = vmatprep.subr.mxu0 0.0
    %256 = vmatpush1.msra.mxu0 0.0
    %257 = vmatprep.subr.mxu0 0.0
    %258 = vmatpush1.msra.mxu0 0.0
    %259 = vmatprep.subr.mxu0 0.0
    %260 = vmatpush1.msra.mxu0 0.0
    %261 = vmatprep.subr.mxu0 0.0
    %262 = vmatpush1.msra.mxu0 0.0
    %263 = vmatprep.subr.mxu0 0.0
    %264 = vmatpush1.msra.mxu0 0.0
    %265 = vmatprep.subr.mxu0 0.0
    %266 = vmatpush1.msra.mxu0 0.0
    %267 = vmatprep.subr.mxu0 0.0
    %268 = vmatpush1.msra.mxu0 0.0
    %269 = vmatprep.subr.mxu0 0.0
    %270 = vmatpush1.msra.mxu0 0.0
    %271 = vmatprep.subr.mxu0 0.0
    %272 = vmatpush1.msra.mxu0 0.0
    %273 = vmatprep.subr.mxu0 0.0
    %274 = vmatpush1.msra.mxu0 0.0
    %275 = vmatprep.subr.mxu0 0.0
    %276 = vmatpush1.msra.mxu0 0.0
    %277 = vmatprep.subr.mxu0 0.0
    %278 = vmatpush1.msra.mxu0 0.0
    %279 = vmatprep.subr.mxu0 0.0
    %280 = vmatpush1.msra.mxu0 0.0
    %281 = vmatprep.subr.mxu0 0.0
    %282 = vmatpush1.msra.mxu0 0.0
    %283 = vmatprep.subr.mxu0 0.0
    %284 = vmatpush1.msra.mxu0 0.0
    %285 = vmatprep.subr.mxu0 0.0
    %286 = vmatpush1.msra.mxu0 0.0
    %287 = vmatprep.subr.mxu0 0.0
    %288 = vmatpush1.msra.mxu0 0.0
    %289 = vmatprep.subr.mxu0 0.0
    %290 = vmatpush1.msra.mxu0 0.0
    %291 = vmatprep.subr.mxu0 0.0
    %292 = vmatpush1.msra.mxu0 0.0
    %293 = vmatprep.subr.mxu0 0.0
    %294 = vmatpush1.msra.mxu0 0.0
    %295 = vmatprep.subr.mxu0 0.0
    %296 = vmatpush1.msra.mxu0 0.0
    %297 = vmatprep.subr.mxu0 0.0
    %298 = vmatpush1.msra.mxu0 0.0
    %299 = vmatprep.mubr.f32.mxu0 0.0
    %300 = vmatmul.mubr.f32.gmra.mrb[0].mxu0 %v90
    %v301 = vpop.f32.mrb[0].mxu0
    %v302 = vadd.f32 %v75, %v301
    %v303 = vpop.f32.mrb[0].mxu0
    %v304 = vadd.f32 %v79, %v303
    %305 = vmatprep.mubr.f32.mxu0 0.0
    %306 = vmatmul.mubr.f32.gmra.mrb[0].mxu0 %v93
    %v307 = vpop.f32.mrb[0].mxu0
    %v308 = vadd.f32 %v75, %v307
    %v309 = vpop.f32.mrb[0].mxu0
    %v310 = vadd.f32 %v79, %v309
    %311 = vmatprep.mubr.f32.mxu0 0.0
    %312 = vmatmul.mubr.f32.gmra.mrb[0].mxu0 %v96
    %v313 = vpop.f32.mrb[0].mxu0
    %v314 = vadd.f32 %v75, %v313
    %v315 = vpop.f32.mrb[0].mxu0
    %v316 = vadd.f32 %v79, %v315
    %317 = vmatprep.mubr.f32.mxu0 0.0
    %318 = vmatmul.mubr.f32.gmra.mrb[0].mxu0 %v99
    %v319 = vpop.f32.mrb[0].mxu0
    %v320 = vadd.f32 %v75, %v319
    %v321 = vpop.f32.mrb[0].mxu0
    %v322 = vadd.f32 %v79, %v321
    %323 = vmatprep.mubr.f32.mxu0 0.0
    %324 = vmatmul.mubr.f32.gmra.mrb[0].mxu0 %v102
    %v325 = vpop.f32.mrb[0].mxu0
    %v326 = vadd.f32 %v75, %v325
    %v327 = vpop.f32.mrb[0].mxu0
    %v328 = vadd.f32 %v79, %v327
    %329 = vmatprep.mubr.f32.mxu0 0.0
    %330 = vmatmul.mubr.f32.gmra.mrb[0].mxu0 %v105
    %v331 = vpop.f32.mrb[0].mxu0
    %v332 = vadd.f32 %v75, %v331
    %v333 = vpop.f32.mrb[0].mxu0
    %v334 = vadd.f32 %v79, %v333
    %335 = vmatprep.mubr.f32.mxu0 0.0
    %336 = vmatmul.mubr.f32.gmra.mrb[0].mxu0 %v108
    %v337 = vpop.f32.mrb[0].mxu0
    %v338 = vadd.f32 %v75, %v337
    %v339 = vpop.f32.mrb[0].mxu0
    %v340 = vadd.f32 %v79, %v339
    %341 = vmatprep.mubr.f32.mxu0 0.0
    %342 = vmatmul.mubr.f32.gmra.mrb[0].mxu0 %v111
    %v343 = vpop.f32.mrb[0].mxu0
    %v344 = vadd.f32 %v75, %v343
    %v345 = vpop.f32.mrb[0].mxu0
    %v346 = vadd.f32 %v79, %v345
    %347 = vdwg.mxu0
    %348 = vst [vmem:[#allocation2] sm:$0xff] %v189
    %349 = vst [vmem:[#allocation2 + $0x8] sm:$0xff] %v191
    %350 = vst [vmem:[#allocation2 + $0x10] sm:$0xff] %v302
    %351 = vst [vmem:[#allocation2 + $0x18] sm:$0xff] %v304
    %352 = vst [vmem:[#allocation2 + $0x20] sm:$0xff] %v195
    %353 = vst [vmem:[#allocation2 + $0x28] sm:$0xff] %v197
    %354 = vst [vmem:[#allocation2 + $0x30] sm:$0xff] %v308
    %355 = vst [vmem:[#allocation2 + $0x38] sm:$0xff] %v310
    %356 = vst [vmem:[#allocation2 + $0x40] sm:$0xff] %v201
    %357 = vst [vmem:[#allocation2 + $0x48] sm:$0xff] %v203
    %358 = vst [vmem:[#allocation2 + $0x50] sm:$0xff] %v314
    %359 = vst [vmem:[#allocation2 + $0x58] sm:$0xff] %v316
    %360 = vst [vmem:[#allocation2 + $0x60] sm:$0xff] %v207
    %361 = vst [vmem:[#allocation2 + $0x68] sm:$0xff] %v209
    %362 = vst [vmem:[#allocation2 + $0x70] sm:$0xff] %v320
    %363 = vst [vmem:[#allocation2 + $0x78] sm:$0xff] %v322
    %364 = vst [vmem:[#allocation2 + $0x80] sm:$0xff] %v213
    %365 = vst [vmem:[#allocation2 + $0x88] sm:$0xff] %v215
    %366 = vst [vmem:[#allocation2 + $0x90] sm:$0xff] %v326
    %367 = vst [vmem:[#allocation2 + $0x98] sm:$0xff] %v328
    %368 = vst [vmem:[#allocation2 + $0xa0] sm:$0xff] %v219
    %369 = vst [vmem:[#allocation2 + $0xa8] sm:$0xff] %v221
    %370 = vst [vmem:[#allocation2 + $0xb0] sm:$0xff] %v332
    %371 = vst [vmem:[#allocation2 + $0xb8] sm:$0xff] %v334
    %372 = vst [vmem:[#allocation2 + $0xc0] sm:$0xff] %v225
    %373 = vst [vmem:[#allocation2 + $0xc8] sm:$0xff] %v227
    %374 = vst [vmem:[#allocation2 + $0xd0] sm:$0xff] %v338
    %375 = vst [vmem:[#allocation2 + $0xd8] sm:$0xff] %v340
    %376 = vst [vmem:[#allocation2 + $0xe0] sm:$0xff] %v231
    %377 = vst [vmem:[#allocation2 + $0xe8] sm:$0xff] %v233
    %378 = vst [vmem:[#allocation2 + $0xf0] sm:$0xff] %v344
    %379 = vst [vmem:[#allocation2 + $0xf8] sm:$0xff] %v346
    %v380 = vld [vmem:[#allocation3] sm:$0xff]
    %v381 = vld [vmem:[#allocation3 + $0x8] sm:$0xff]
    %v382 = vld [vmem:[#allocation3 + $0x10] sm:$0xff]
    %v383 = vld [vmem:[#allocation3 + $0x18] sm:$0xff]
    %v384 = vld [vmem:[#allocation3 + $0x20] sm:$0xff]
    %v385 = vld [vmem:[#allocation3 + $0x28] sm:$0xff]
    %v386 = vld [vmem:[#allocation3 + $0x30] sm:$0xff]
    %v387 = vld [vmem:[#allocation3 + $0x38] sm:$0xff]
    %v388 = vld [vmem:[#allocation3 + $0x40] sm:$0xff]
    %v389 = vld [vmem:[#allocation3 + $0x48] sm:$0xff]
    %v390 = vld [vmem:[#allocation3 + $0x50] sm:$0xff]
    %v391 = vld [vmem:[#allocation3 + $0x58] sm:$0xff]
    %v392 = vld [vmem:[#allocation3 + $0x60] sm:$0xff]
    %v393 = vld [vmem:[#allocation3 + $0x68] sm:$0xff]
    %v394 = vld [vmem:[#allocation3 + $0x70] sm:$0xff]
    %v395 = vld [vmem:[#allocation3 + $0x78] sm:$0xff]
    %v396 = vld [vmem:[#allocation3 + $0x80] sm:$0xff]
    %v397 = vld [vmem:[#allocation3 + $0x88] sm:$0xff]
    %v398 = vld [vmem:[#allocation3 + $0x90] sm:$0xff]
    %v399 = vld [vmem:[#allocation3 + $0x98] sm:$0xff]
    %v400 = vld [vmem:[#allocation3 + $0xa0] sm:$0xff]
    %v401 = vld [vmem:[#allocation3 + $0xa8] sm:$0xff]
    %v402 = vld [vmem:[#allocation3 + $0xb0] sm:$0xff]
    %v403 = vld [vmem:[#allocation3 + $0xb8] sm:$0xff]
    %v404 = vld [vmem:[#allocation3 + $0xc0] sm:$0xff]
    %v405 = vld [vmem:[#allocation3 + $0xc8] sm:$0xff]
    %v406 = vld [vmem:[#allocation3 + $0xd0] sm:$0xff]
    %v407 = vld [vmem:[#allocation3 + $0xd8] sm:$0xff]
    %v408 = vld [vmem:[#allocation3 + $0xe0] sm:$0xff]
    %v409 = vld [vmem:[#allocation3 + $0xe8] sm:$0xff]
    %v410 = vld [vmem:[#allocation3 + $0xf0] sm:$0xff]
    %v411 = vld [vmem:[#allocation3 + $0xf8] sm:$0xff]
    %v412 = vld [vmem:[#allocation3 + $0x100] sm:$0xff]
    %v413 = vld [vmem:[#allocation3 + $0x108] sm:$0xff]
    %v414 = vld [vmem:[#allocation3 + $0x110] sm:$0xff]
    %v415 = vld [vmem:[#allocation3 + $0x118] sm:$0xff]
    %v416 = vld [vmem:[#allocation3 + $0x120] sm:$0xff]
    %v417 = vld [vmem:[#allocation3 + $0x128] sm:$0xff]
    %v418 = vld [vmem:[#allocation3 + $0x130] sm:$0xff]
    %v419 = vld [vmem:[#allocation3 + $0x138] sm:$0xff]
    %v420 = vld [vmem:[#allocation3 + $0x140] sm:$0xff]
    %v421 = vld [vmem:[#allocation3 + $0x148] sm:$0xff]
    %v422 = vld [vmem:[#allocation3 + $0x150] sm:$0xff]
    %v423 = vld [vmem:[#allocation3 + $0x158] sm:$0xff]
    %v424 = vld [vmem:[#allocation3 + $0x160] sm:$0xff]
    %v425 = vld [vmem:[#allocation3 + $0x168] sm:$0xff]
    %v426 = vld [vmem:[#allocation3 + $0x170] sm:$0xff]
    %v427 = vld [vmem:[#allocation3 + $0x178] sm:$0xff]
    %v428 = vld [vmem:[#allocation3 + $0x180] sm:$0xff]
    %v429 = vld [vmem:[#allocation3 + $0x188] sm:$0xff]
    %v430 = vld [vmem:[#allocation3 + $0x190] sm:$0xff]
    %v431 = vld [vmem:[#allocation3 + $0x198] sm:$0xff]
    %v432 = vld [vmem:[#allocation3 + $0x1a0] sm:$0xff]
    %v433 = vld [vmem:[#allocation3 + $0x1a8] sm:$0xff]
    %v434 = vld [vmem:[#allocation3 + $0x1b0] sm:$0xff]
    %v435 = vld [vmem:[#allocation3 + $0x1b8] sm:$0xff]
    %v436 = vld [vmem:[#allocation3 + $0x1c0] sm:$0xff]
    %v437 = vld [vmem:[#allocation3 + $0x1c8] sm:$0xff]
    %v438 = vld [vmem:[#allocation3 + $0x1d0] sm:$0xff]
    %v439 = vld [vmem:[#allocation3 + $0x1d8] sm:$0xff]
    %v440 = vld [vmem:[#allocation3 + $0x1e0] sm:$0xff]
    %v441 = vld [vmem:[#allocation3 + $0x1e8] sm:$0xff]
    %v442 = vld [vmem:[#allocation3 + $0x1f0] sm:$0xff]
    %v443 = vld [vmem:[#allocation3 + $0x1f8] sm:$0xff]
    %v444 = vld [vmem:[#allocation2] sm:$0xff]
    %v445 = vld [vmem:[#allocation2 + $0x8] sm:$0xff]
    %v446 = vld [vmem:[#allocation2 + $0x10] sm:$0xff]
    %v447 = vld [vmem:[#allocation2 + $0x18] sm:$0xff]
    %448 = vmatprep.subr.mxu0 %v381
    %449 = vmatpush1.msra.mxu0 %v380
    %450 = vmatprep.subr.mxu0 %v385
    %451 = vmatpush1.msra.mxu0 %v384
    %452 = vmatprep.subr.mxu0 %v389
    %453 = vmatpush1.msra.mxu0 %v388
    %454 = vmatprep.subr.mxu0 %v393
    %455 = vmatpush1.msra.mxu0 %v392
    %456 = vmatprep.subr.mxu0 %v397
    %457 = vmatpush1.msra.mxu0 %v396
    %458 = vmatprep.subr.mxu0 %v401
    %459 = vmatpush1.msra.mxu0 %v400
    %460 = vmatprep.subr.mxu0 %v405
    %461 = vmatpush1.msra.mxu0 %v404
    %462 = vmatprep.subr.mxu0 %v409
    %463 = vmatpush1.msra.mxu0 %v408
    %464 = vmatprep.subr.mxu0 %v413
    %465 = vmatpush1.msra.mxu0 %v412
    %466 = vmatprep.subr.mxu0 %v417
    %467 = vmatpush1.msra.mxu0 %v416
    %468 = vmatprep.subr.mxu0 %v421
    %469 = vmatpush1.msra.mxu0 %v420
    %470 = vmatprep.subr.mxu0 %v425
    %471 = vmatpush1.msra.mxu0 %v424
    %472 = vmatprep.subr.mxu0 %v429
    %473 = vmatpush1.msra.mxu0 %v428
    %474 = vmatprep.subr.mxu0 %v433
    %475 = vmatpush1.msra.mxu0 %v432
    %476 = vmatprep.subr.mxu0 %v437
    %477 = vmatpush1.msra.mxu0 %v436
    %478 = vmatprep.subr.mxu0 %v441
    %479 = vmatpush1.msra.mxu0 %v440
    %480 = vmatprep.subr.mxu0 0.0
    %481 = vmatpush1.msra.mxu0 0.0
    %482 = vmatprep.subr.mxu0 0.0
    %483 = vmatpush1.msra.mxu0 0.0
    %484 = vmatprep.subr.mxu0 0.0
    %485 = vmatpush1.msra.mxu0 0.0
    %486 = vmatprep.subr.mxu0 0.0
    %487 = vmatpush1.msra.mxu0 0.0
    %488 = vmatprep.subr.mxu0 0.0
    %489 = vmatpush1.msra.mxu0 0.0
    %490 = vmatprep.subr.mxu0 0.0
    %491 = vmatpush1.msra.mxu0 0.0
    %492 = vmatprep.subr.mxu0 0.0
    %493 = vmatpush1.msra.mxu0 0.0
    %494 = vmatprep.subr.mxu0 0.0
    %495 = vmatpush1.msra.mxu0 0.0
    %496 = vmatprep.subr.mxu0 0.0
    %497 = vmatpush1.msra.mxu0 0.0
    %498 = vmatprep.subr.mxu0 0.0
    %499 = vmatpush1.msra.mxu0 0.0
    %500 = vmatprep.subr.mxu0 0.0
    %501 = vmatpush1.msra.mxu0 0.0
    %502 = vmatprep.subr.mxu0 0.0
    %503 = vmatpush1.msra.mxu0 0.0
    %504 = vmatprep.subr.mxu0 0.0
    %505 = vmatpush1.msra.mxu0 0.0
    %506 = vmatprep.subr.mxu0 0.0
    %507 = vmatpush1.msra.mxu0 0.0
    %508 = vmatprep.subr.mxu0 0.0
    %509 = vmatpush1.msra.mxu0 0.0
    %510 = vmatprep.subr.mxu0 0.0
    %511 = vmatpush1.msra.mxu0 0.0
    %512 = vmatprep.mubr.f32.mxu0 0.0
    %513 = vmatmul.mubr.f32.gmra.mrb[0].mxu0 0.0
    %v514 = vpop.f32.mrb[0].mxu0
    %v515 = vadd.f32 0.0, %v514
    %v516 = vpop.f32.mrb[0].mxu0
    %v517 = vadd.f32 0.0, %v516
    %518 = vdwg.mxu0
    %519 = vmatprep.subr.mxu0 %v383
    %520 = vmatpush1.msra.mxu0 %v382
    %521 = vmatprep.subr.mxu0 %v387
    %522 = vmatpush1.msra.mxu0 %v386
    %523 = vmatprep.subr.mxu0 %v391
    %524 = vmatpush1.msra.mxu0 %v390
    %525 = vmatprep.subr.mxu0 %v395
    %526 = vmatpush1.msra.mxu0 %v394
    %527 = vmatprep.subr.mxu0 %v399
    %528 = vmatpush1.msra.mxu0 %v398
    %529 = vmatprep.subr.mxu0 %v403
    %530 = vmatpush1.msra.mxu0 %v402
    %531 = vmatprep.subr.mxu0 %v407
    %532 = vmatpush1.msra.mxu0 %v406
    %533 = vmatprep.subr.mxu0 %v411
    %534 = vmatpush1.msra.mxu0 %v410
    %535 = vmatprep.subr.mxu0 %v415
    %536 = vmatpush1.msra.mxu0 %v414
    %537 = vmatprep.subr.mxu0 %v419
    %538 = vmatpush1.msra.mxu0 %v418
    %539 = vmatprep.subr.mxu0 %v423
    %540 = vmatpush1.msra.mxu0 %v422
    %541 = vmatprep.subr.mxu0 %v427
    %542 = vmatpush1.msra.mxu0 %v426
    %543 = vmatprep.subr.mxu0 %v431
    %544 = vmatpush1.msra.mxu0 %v430
    %545 = vmatprep.subr.mxu0 %v435
    %546 = vmatpush1.msra.mxu0 %v434
    %547 = vmatprep.subr.mxu0 %v439
    %548 = vmatpush1.msra.mxu0 %v438
    %549 = vmatprep.subr.mxu0 %v443
    %550 = vmatpush1.msra.mxu0 %v442
    %551 = vmatprep.subr.mxu0 0.0
    %552 = vmatpush1.msra.mxu0 0.0
    %553 = vmatprep.subr.mxu0 0.0
    %554 = vmatpush1.msra.mxu0 0.0
    %555 = vmatprep.subr.mxu0 0.0
    %556 = vmatpush1.msra.mxu0 0.0
    %557 = vmatprep.subr.mxu0 0.0
    %558 = vmatpush1.msra.mxu0 0.0
    %559 = vmatprep.subr.mxu0 0.0
    %560 = vmatpush1.msra.mxu0 0.0
    %561 = vmatprep.subr.mxu0 0.0
    %562 = vmatpush1.msra.mxu0 0.0
    %563 = vmatprep.subr.mxu0 0.0
    %564 = vmatpush1.msra.mxu0 0.0
    %565 = vmatprep.subr.mxu0 0.0
    %566 = vmatpush1.msra.mxu0 0.0
    %567 = vmatprep.subr.mxu0 0.0
    %568 = vmatpush1.msra.mxu0 0.0
    %569 = vmatprep.subr.mxu0 0.0
    %570 = vmatpush1.msra.mxu0 0.0
    %571 = vmatprep.subr.mxu0 0.0
    %572 = vmatpush1.msra.mxu0 0.0
    %573 = vmatprep.subr.mxu0 0.0
    %574 = vmatpush1.msra.mxu0 0.0
    %575 = vmatprep.subr.mxu0 0.0
    %576 = vmatpush1.msra.mxu0 0.0
    %577 = vmatprep.subr.mxu0 0.0
    %578 = vmatpush1.msra.mxu0 0.0
    %579 = vmatprep.subr.mxu0 0.0
    %580 = vmatpush1.msra.mxu0 0.0
    %581 = vmatprep.subr.mxu0 0.0
    %582 = vmatpush1.msra.mxu0 0.0
    %583 = vmatprep.mubr.f32.mxu0 0.0
    %584 = vmatmul.mubr.f32.gmra.mrb[0].mxu0 0.0
    %v585 = vpop.f32.mrb[0].mxu0
    %v586 = vadd.f32 0.0, %v585
    %v587 = vpop.f32.mrb[0].mxu0
    %v588 = vadd.f32 0.0, %v587
    %589 = vdwg.mxu0
    %v590 = vadd.f32 %v444, %v515
    %v591 = vadd.f32 %v445, %v517
    %v592 = vadd.f32 %v446, %v586
    %v593 = vadd.f32 %v447, %v588
    %v594 = vxor.u32 %v590, 2147483648
    %v595 = vmul.f32 %v594, 1.442695
    %v596 = vpow.pop %v595
    %v597 = vadd.f32 %v596, 1.0
    %v598 = vrcp.pop %v597
    %v599 = vmul.f32 1.0, %v598
    %v600 = vxor.u32 %v591, 2147483648
    %v601 = vmul.f32 %v600, 1.442695
    %v602 = vpow.pop %v601
    %v603 = vadd.f32 %v602, 1.0
    %v604 = vrcp.pop %v603
    %v605 = vmul.f32 1.0, %v604
    %v606 = vtanh.pop %v592
    %v607 = vxor.u32 %v593, 2147483648
    %v608 = vmul.f32 %v607, 1.442695
    %v609 = vpow.pop %v608
    %v610 = vadd.f32 %v609, 1.0
    %v611 = vrcp.pop %v610
    %v612 = vmul.f32 1.0, %v611
    %v613 = vmul.f32 %v605, 0.0
    %v614 = vmul.f32 %v599, %v606
    %v615 = vadd.f32 %v613, %v614
    %v616 = vtanh.pop %v615
    %v617 = vmul.f32 %v612, %v616
    %s618 = scalar_lea.vmem [#allocation2], 32
    %v619 = vld [vmem:[%s618] sm:$0xff]
    %v620 = vld [vmem:[%s618 + $0x8] sm:$0xff]
    %v621 = vld [vmem:[%s618 + $0x10] sm:$0xff]
    %v622 = vld [vmem:[%s618 + $0x18] sm:$0xff]
    %623 = vmatprep.subr.mxu0 %v381
    %624 = vmatpush1.msra.mxu0 %v380
    %625 = vmatprep.subr.mxu0 %v385
    %626 = vmatpush1.msra.mxu0 %v384
    %627 = vmatprep.subr.mxu0 %v389
    %628 = vmatpush1.msra.mxu0 %v388
    %629 = vmatprep.subr.mxu0 %v393
    %630 = vmatpush1.msra.mxu0 %v392
    %631 = vmatprep.subr.mxu0 %v397
    %632 = vmatpush1.msra.mxu0 %v396
    %633 = vmatprep.subr.mxu0 %v401
    %634 = vmatpush1.msra.mxu0 %v400
    %635 = vmatprep.subr.mxu0 %v405
    %636 = vmatpush1.msra.mxu0 %v404
    %637 = vmatprep.subr.mxu0 %v409
    %638 = vmatpush1.msra.mxu0 %v408
    %639 = vmatprep.subr.mxu0 %v413
    %640 = vmatpush1.msra.mxu0 %v412
    %641 = vmatprep.subr.mxu0 %v417
    %642 = vmatpush1.msra.mxu0 %v416
    %643 = vmatprep.subr.mxu0 %v421
    %644 = vmatpush1.msra.mxu0 %v420
    %645 = vmatprep.subr.mxu0 %v425
    %646 = vmatpush1.msra.mxu0 %v424
    %647 = vmatprep.subr.mxu0 %v429
    %648 = vmatpush1.msra.mxu0 %v428
    %649 = vmatprep.subr.mxu0 %v433
    %650 = vmatpush1.msra.mxu0 %v432
    %651 = vmatprep.subr.mxu0 %v437
    %652 = vmatpush1.msra.mxu0 %v436
    %653 = vmatprep.subr.mxu0 %v441
    %654 = vmatpush1.msra.mxu0 %v440
    %655 = vmatprep.subr.mxu0 0.0
    %656 = vmatpush1.msra.mxu0 0.0
    %657 = vmatprep.subr.mxu0 0.0
    %658 = vmatpush1.msra.mxu0 0.0
    %659 = vmatprep.subr.mxu0 0.0
    %660 = vmatpush1.msra.mxu0 0.0
    %661 = vmatprep.subr.mxu0 0.0
    %662 = vmatpush1.msra.mxu0 0.0
    %663 = vmatprep.subr.mxu0 0.0
    %664 = vmatpush1.msra.mxu0 0.0
    %665 = vmatprep.subr.mxu0 0.0
    %666 = vmatpush1.msra.mxu0 0.0
    %667 = vmatprep.subr.mxu0 0.0
    %668 = vmatpush1.msra.mxu0 0.0
    %669 = vmatprep.subr.mxu0 0.0
    %670 = vmatpush1.msra.mxu0 0.0
    %671 = vmatprep.subr.mxu0 0.0
    %672 = vmatpush1.msra.mxu0 0.0
    %673 = vmatprep.subr.mxu0 0.0
    %674 = vmatpush1.msra.mxu0 0.0
    %675 = vmatprep.subr.mxu0 0.0
    %676 = vmatpush1.msra.mxu0 0.0
    %677 = vmatprep.subr.mxu0 0.0
    %678 = vmatpush1.msra.mxu0 0.0
    %679 = vmatprep.subr.mxu0 0.0
    %680 = vmatpush1.msra.mxu0 0.0
    %681 = vmatprep.subr.mxu0 0.0
    %682 = vmatpush1.msra.mxu0 0.0
    %683 = vmatprep.subr.mxu0 0.0
    %684 = vmatpush1.msra.mxu0 0.0
    %685 = vmatprep.subr.mxu0 0.0
    %686 = vmatpush1.msra.mxu0 0.0
    %687 = vmatprep.mubr.f32.mxu0 0.0
    %688 = vmatmul.mubr.f32.gmra.mrb[0].mxu0 %v617
    %v689 = vpop.f32.mrb[0].mxu0
    %v690 = vadd.f32 0.0, %v689
    %v691 = vpop.f32.mrb[0].mxu0
    %v692 = vadd.f32 0.0, %v691
    %693 = vdwg.mxu0
    %694 = vmatprep.subr.mxu0 %v383
    %695 = vmatpush1.msra.mxu0 %v382
    %696 = vmatprep.subr.mxu0 %v387
    %697 = vmatpush1.msra.mxu0 %v386
    %698 = vmatprep.subr.mxu0 %v391
    %699 = vmatpush1.msra.mxu0 %v390
    %700 = vmatprep.subr.mxu0 %v395
    %701 = vmatpush1.msra.mxu0 %v394
    %702 = vmatprep.subr.mxu0 %v399
    %703 = vmatpush1.msra.mxu0 %v398
    %704 = vmatprep.subr.mxu0 %v403
    %705 = vmatpush1.msra.mxu0 %v402
    %706 = vmatprep.subr.mxu0 %v407
    %707 = vmatpush1.msra.mxu0 %v406
    %708 = vmatprep.subr.mxu0 %v411
    %709 = vmatpush1.msra.mxu0 %v410
    %710 = vmatprep.subr.mxu0 %v415
    %711 = vmatpush1.msra.mxu0 %v414
    %712 = vmatprep.subr.mxu0 %v419
    %713 = vmatpush1.msra.mxu0 %v418
    %714 = vmatprep.subr.mxu0 %v423
    %715 = vmatpush1.msra.mxu0 %v422
    %716 = vmatprep.subr.mxu0 %v427
    %717 = vmatpush1.msra.mxu0 %v426
    %718 = vmatprep.subr.mxu0 %v431
    %719 = vmatpush1.msra.mxu0 %v430
    %720 = vmatprep.subr.mxu0 %v435
    %721 = vmatpush1.msra.mxu0 %v434
    %722 = vmatprep.subr.mxu0 %v439
    %723 = vmatpush1.msra.mxu0 %v438
    %724 = vmatprep.subr.mxu0 %v443
    %725 = vmatpush1.msra.mxu0 %v442
    %726 = vmatprep.subr.mxu0 0.0
    %727 = vmatpush1.msra.mxu0 0.0
    %728 = vmatprep.subr.mxu0 0.0
    %729 = vmatpush1.msra.mxu0 0.0
    %730 = vmatprep.subr.mxu0 0.0
    %731 = vmatpush1.msra.mxu0 0.0
    %732 = vmatprep.subr.mxu0 0.0
    %733 = vmatpush1.msra.mxu0 0.0
    %734 = vmatprep.subr.mxu0 0.0
    %735 = vmatpush1.msra.mxu0 0.0
    %736 = vmatprep.subr.mxu0 0.0
    %737 = vmatpush1.msra.mxu0 0.0
    %738 = vmatprep.subr.mxu0 0.0
    %739 = vmatpush1.msra.mxu0 0.0
    %740 = vmatprep.subr.mxu0 0.0
    %741 = vmatpush1.msra.mxu0 0.0
    %742 = vmatprep.subr.mxu0 0.0
    %743 = vmatpush1.msra.mxu0 0.0
    %744 = vmatprep.subr.mxu0 0.0
    %745 = vmatpush1.msra.mxu0 0.0
    %746 = vmatprep.subr.mxu0 0.0
    %747 = vmatpush1.msra.mxu0 0.0
    %748 = vmatprep.subr.mxu0 0.0
    %749 = vmatpush1.msra.mxu0 0.0
    %750 = vmatprep.subr.mxu0 0.0
    %751 = vmatpush1.msra.mxu0 0.0
    %752 = vmatprep.subr.mxu0 0.0
    %753 = vmatpush1.msra.mxu0 0.0
    %754 = vmatprep.subr.mxu0 0.0
    %755 = vmatpush1.msra.mxu0 0.0
    %756 = vmatprep.subr.mxu0 0.0
    %757 = vmatpush1.msra.mxu0 0.0
    %758 = vmatprep.mubr.f32.mxu0 0.0
    %759 = vmatmul.mubr.f32.gmra.mrb[0].mxu0 %v617
    %v760 = vpop.f32.mrb[0].mxu0
    %v761 = vadd.f32 0.0, %v760
    %v762 = vpop.f32.mrb[0].mxu0
    %v763 = vadd.f32 0.0, %v762
    %764 = vdwg.mxu0
    %v765 = vadd.f32 %v619, %v690
    %v766 = vadd.f32 %v620, %v692
    %v767 = vadd.f32 %v621, %v761
    %v768 = vadd.f32 %v622, %v763
    %v769 = vxor.u32 %v765, 2147483648
    %v770 = vmul.f32 %v769, 1.442695
    %v771 = vpow.pop %v770
    %v772 = vadd.f32 %v771, 1.0
    %v773 = vrcp.pop %v772
    %v774 = vmul.f32 1.0, %v773
    %v775 = vxor.u32 %v766, 2147483648
    %v776 = vmul.f32 %v775, 1.442695
    %v777 = vpow.pop %v776
    %v778 = vadd.f32 %v777, 1.0
    %v779 = vrcp.pop %v778
    %v780 = vmul.f32 1.0, %v779
    %v781 = vtanh.pop %v767
    %v782 = vxor.u32 %v768, 2147483648
    %v783 = vmul.f32 %v782, 1.442695
    %v784 = vpow.pop %v783
    %v785 = vadd.f32 %v784, 1.0
    %v786 = vrcp.pop %v785
    %v787 = vmul.f32 1.0, %v786
    %v788 = vmul.f32 %v780, %v615
    %v789 = vmul.f32 %v774, %v781
    %v790 = vadd.f32 %v788, %v789
    %v791 = vtanh.pop %v790
    %v792 = vmul.f32 %v787, %v791
    %s793 = scalar_lea.vmem [#allocation2], 64
    %v794 = vld [vmem:[%s793] sm:$0xff]
    %v795 = vld [vmem:[%s793 + $0x8] sm:$0xff]
    %v796 = vld [vmem:[%s793 + $0x10] sm:$0xff]
    %v797 = vld [vmem:[%s793 + $0x18] sm:$0xff]
    %798 = vmatprep.subr.mxu0 %v381
    %799 = vmatpush1.msra.mxu0 %v380
    %800 = vmatprep.subr.mxu0 %v385
    %801 = vmatpush1.msra.mxu0 %v384
    %802 = vmatprep.subr.mxu0 %v389
    %803 = vmatpush1.msra.mxu0 %v388
    %804 = vmatprep.subr.mxu0 %v393
    %805 = vmatpush1.msra.mxu0 %v392
    %806 = vmatprep.subr.mxu0 %v397
    %807 = vmatpush1.msra.mxu0 %v396
    %808 = vmatprep.subr.mxu0 %v401
    %809 = vmatpush1.msra.mxu0 %v400
    %810 = vmatprep.subr.mxu0 %v405
    %811 = vmatpush1.msra.mxu0 %v404
    %812 = vmatprep.subr.mxu0 %v409
    %813 = vmatpush1.msra.mxu0 %v408
    %814 = vmatprep.subr.mxu0 %v413
    %815 = vmatpush1.msra.mxu0 %v412
    %816 = vmatprep.subr.mxu0 %v417
    %817 = vmatpush1.msra.mxu0 %v416
    %818 = vmatprep.subr.mxu0 %v421
    %819 = vmatpush1.msra.mxu0 %v420
    %820 = vmatprep.subr.mxu0 %v425
    %821 = vmatpush1.msra.mxu0 %v424
    %822 = vmatprep.subr.mxu0 %v429
    %823 = vmatpush1.msra.mxu0 %v428
    %824 = vmatprep.subr.mxu0 %v433
    %825 = vmatpush1.msra.mxu0 %v432
    %826 = vmatprep.subr.mxu0 %v437
    %827 = vmatpush1.msra.mxu0 %v436
    %828 = vmatprep.subr.mxu0 %v441
    %829 = vmatpush1.msra.mxu0 %v440
    %830 = vmatprep.subr.mxu0 0.0
    %831 = vmatpush1.msra.mxu0 0.0
    %832 = vmatprep.subr.mxu0 0.0
    %833 = vmatpush1.msra.mxu0 0.0
    %834 = vmatprep.subr.mxu0 0.0
    %835 = vmatpush1.msra.mxu0 0.0
    %836 = vmatprep.subr.mxu0 0.0
    %837 = vmatpush1.msra.mxu0 0.0
    %838 = vmatprep.subr.mxu0 0.0
    %839 = vmatpush1.msra.mxu0 0.0
    %840 = vmatprep.subr.mxu0 0.0
    %841 = vmatpush1.msra.mxu0 0.0
    %842 = vmatprep.subr.mxu0 0.0
    %843 = vmatpush1.msra.mxu0 0.0
    %844 = vmatprep.subr.mxu0 0.0
    %845 = vmatpush1.msra.mxu0 0.0
    %846 = vmatprep.subr.mxu0 0.0
    %847 = vmatpush1.msra.mxu0 0.0
    %848 = vmatprep.subr.mxu0 0.0
    %849 = vmatpush1.msra.mxu0 0.0
    %850 = vmatprep.subr.mxu0 0.0
    %851 = vmatpush1.msra.mxu0 0.0
    %852 = vmatprep.subr.mxu0 0.0
    %853 = vmatpush1.msra.mxu0 0.0
    %854 = vmatprep.subr.mxu0 0.0
    %855 = vmatpush1.msra.mxu0 0.0
    %856 = vmatprep.subr.mxu0 0.0
    %857 = vmatpush1.msra.mxu0 0.0
    %858 = vmatprep.subr.mxu0 0.0
    %859 = vmatpush1.msra.mxu0 0.0
    %860 = vmatprep.subr.mxu0 0.0
    %861 = vmatpush1.msra.mxu0 0.0
    %862 = vmatprep.mubr.f32.mxu0 0.0
    %863 = vmatmul.mubr.f32.gmra.mrb[0].mxu0 %v792
    %v864 = vpop.f32.mrb[0].mxu0
    %v865 = vadd.f32 0.0, %v864
    %v866 = vpop.f32.mrb[0].mxu0
    %v867 = vadd.f32 0.0, %v866
    %868 = vdwg.mxu0
    %869 = vmatprep.subr.mxu0 %v383
    %870 = vmatpush1.msra.mxu0 %v382
    %871 = vmatprep.subr.mxu0 %v387
    %872 = vmatpush1.msra.mxu0 %v386
    %873 = vmatprep.subr.mxu0 %v391
    %874 = vmatpush1.msra.mxu0 %v390
    %875 = vmatprep.subr.mxu0 %v395
    %876 = vmatpush1.msra.mxu0 %v394
    %877 = vmatprep.subr.mxu0 %v399
    %878 = vmatpush1.msra.mxu0 %v398
    %879 = vmatprep.subr.mxu0 %v403
    %880 = vmatpush1.msra.mxu0 %v402
    %881 = vmatprep.subr.mxu0 %v407
    %882 = vmatpush1.msra.mxu0 %v406
    %883 = vmatprep.subr.mxu0 %v411
    %884 = vmatpush1.msra.mxu0 %v410
    %885 = vmatprep.subr.mxu0 %v415
    %886 = vmatpush1.msra.mxu0 %v414
    %887 = vmatprep.subr.mxu0 %v419
    %888 = vmatpush1.msra.mxu0 %v418
    %889 = vmatprep.subr.mxu0 %v423
    %890 = vmatpush1.msra.mxu0 %v422
    %891 = vmatprep.subr.mxu0 %v427
    %892 = vmatpush1.msra.mxu0 %v426
    %893 = vmatprep.subr.mxu0 %v431
    %894 = vmatpush1.msra.mxu0 %v430
    %895 = vmatprep.subr.mxu0 %v435
    %896 = vmatpush1.msra.mxu0 %v434
    %897 = vmatprep.subr.mxu0 %v439
    %898 = vmatpush1.msra.mxu0 %v438
    %899 = vmatprep.subr.mxu0 %v443
    %900 = vmatpush1.msra.mxu0 %v442
    %901 = vmatprep.subr.mxu0 0.0
    %902 = vmatpush1.msra.mxu0 0.0
    %903 = vmatprep.subr.mxu0 0.0
    %904 = vmatpush1.msra.mxu0 0.0
    %905 = vmatprep.subr.mxu0 0.0
    %906 = vmatpush1.msra.mxu0 0.0
    %907 = vmatprep.subr.mxu0 0.0
    %908 = vmatpush1.msra.mxu0 0.0
    %909 = vmatprep.subr.mxu0 0.0
    %910 = vmatpush1.msra.mxu0 0.0
    %911 = vmatprep.subr.mxu0 0.0
    %912 = vmatpush1.msra.mxu0 0.0
    %913 = vmatprep.subr.mxu0 0.0
    %914 = vmatpush1.msra.mxu0 0.0
    %915 = vmatprep.subr.mxu0 0.0
    %916 = vmatpush1.msra.mxu0 0.0
    %917 = vmatprep.subr.mxu0 0.0
    %918 = vmatpush1.msra.mxu0 0.0
    %919 = vmatprep.subr.mxu0 0.0
    %920 = vmatpush1.msra.mxu0 0.0
    %921 = vmatprep.subr.mxu0 0.0
    %922 = vmatpush1.msra.mxu0 0.0
    %923 = vmatprep.subr.mxu0 0.0
    %924 = vmatpush1.msra.mxu0 0.0
    %925 = vmatprep.subr.mxu0 0.0
    %926 = vmatpush1.msra.mxu0 0.0
    %927 = vmatprep.subr.mxu0 0.0
    %928 = vmatpush1.msra.mxu0 0.0
    %929 = vmatprep.subr.mxu0 0.0
    %930 = vmatpush1.msra.mxu0 0.0
    %931 = vmatprep.subr.mxu0 0.0
    %932 = vmatpush1.msra.mxu0 0.0
    %933 = vmatprep.mubr.f32.mxu0 0.0
    %934 = vmatmul.mubr.f32.gmra.mrb[0].mxu0 %v792
    %v935 = vpop.f32.mrb[0].mxu0
    %v936 = vadd.f32 0.0, %v935
    %v937 = vpop.f32.mrb[0].mxu0
    %v938 = vadd.f32 0.0, %v937
    %939 = vdwg.mxu0
    %v940 = vadd.f32 %v794, %v865
    %v941 = vadd.f32 %v795, %v867
    %v942 = vadd.f32 %v796, %v936
    %v943 = vadd.f32 %v797, %v938
    %v944 = vxor.u32 %v940, 2147483648
    %v945 = vmul.f32 %v944, 1.442695
    %v946 = vpow.pop %v945
    %v947 = vadd.f32 %v946, 1.0
    %v948 = vrcp.pop %v947
    %v949 = vmul.f32 1.0, %v948
    %v950 = vxor.u32 %v941, 2147483648
    %v951 = vmul.f32 %v950, 1.442695
    %v952 = vpow.pop %v951
    %v953 = vadd.f32 %v952, 1.0
    %v954 = vrcp.pop %v953
    %v955 = vmul.f32 1.0, %v954
    %v956 = vtanh.pop %v942
    %v957 = vxor.u32 %v943, 2147483648
    %v958 = vmul.f32 %v957, 1.442695
    %v959 = vpow.pop %v958
    %v960 = vadd.f32 %v959, 1.0
    %v961 = vrcp.pop %v960
    %v962 = vmul.f32 1.0, %v961
    %v963 = vmul.f32 %v955, %v790
    %v964 = vmul.f32 %v949, %v956
    %v965 = vadd.f32 %v963, %v964
    %v966 = vtanh.pop %v965
    %v967 = vmul.f32 %v962, %v966
    %s968 = scalar_lea.vmem [#allocation2], 96
    %v969 = vld [vmem:[%s968] sm:$0xff]
    %v970 = vld [vmem:[%s968 + $0x8] sm:$0xff]
    %v971 = vld [vmem:[%s968 + $0x10] sm:$0xff]
    %v972 = vld [vmem:[%s968 + $0x18] sm:$0xff]
    %973 = vmatprep.subr.mxu0 %v381
    %974 = vmatpush1.msra.mxu0 %v380
    %975 = vmatprep.subr.mxu0 %v385
    %976 = vmatpush1.msra.mxu0 %v384
    %977 = vmatprep.subr.mxu0 %v389
    %978 = vmatpush1.msra.mxu0 %v388
    %979 = vmatprep.subr.mxu0 %v393
    %980 = vmatpush1.msra.mxu0 %v392
    %981 = vmatprep.subr.mxu0 %v397
    %982 = vmatpush1.msra.mxu0 %v396
    %983 = vmatprep.subr.mxu0 %v401
    %984 = vmatpush1.msra.mxu0 %v400
    %985 = vmatprep.subr.mxu0 %v405
    %986 = vmatpush1.msra.mxu0 %v404
    %987 = vmatprep.subr.mxu0 %v409
    %988 = vmatpush1.msra.mxu0 %v408
    %989 = vmatprep.subr.mxu0 %v413
    %990 = vmatpush1.msra.mxu0 %v412
    %991 = vmatprep.subr.mxu0 %v417
    %992 = vmatpush1.msra.mxu0 %v416
    %993 = vmatprep.subr.mxu0 %v421
    %994 = vmatpush1.msra.mxu0 %v420
    %995 = vmatprep.subr.mxu0 %v425
    %996 = vmatpush1.msra.mxu0 %v424
    %997 = vmatprep.subr.mxu0 %v429
    %998 = vmatpush1.msra.mxu0 %v428
    %999 = vmatprep.subr.mxu0 %v433
    %1000 = vmatpush1.msra.mxu0 %v432
    %1001 = vmatprep.subr.mxu0 %v437
    %1002 = vmatpush1.msra.mxu0 %v436
    %1003 = vmatprep.subr.mxu0 %v441
    %1004 = vmatpush1.msra.mxu0 %v440
    %1005 = vmatprep.subr.mxu0 0.0
    %1006 = vmatpush1.msra.mxu0 0.0
    %1007 = vmatprep.subr.mxu0 0.0
    %1008 = vmatpush1.msra.mxu0 0.0
    %1009 = vmatprep.subr.mxu0 0.0
    %1010 = vmatpush1.msra.mxu0 0.0
    %1011 = vmatprep.subr.mxu0 0.0
    %1012 = vmatpush1.msra.mxu0 0.0
    %1013 = vmatprep.subr.mxu0 0.0
    %1014 = vmatpush1.msra.mxu0 0.0
    %1015 = vmatprep.subr.mxu0 0.0
    %1016 = vmatpush1.msra.mxu0 0.0
    %1017 = vmatprep.subr.mxu0 0.0
    %1018 = vmatpush1.msra.mxu0 0.0
    %1019 = vmatprep.subr.mxu0 0.0
    %1020 = vmatpush1.msra.mxu0 0.0
    %1021 = vmatprep.subr.mxu0 0.0
    %1022 = vmatpush1.msra.mxu0 0.0
    %1023 = vmatprep.subr.mxu0 0.0
    %1024 = vmatpush1.msra.mxu0 0.0
    %1025 = vmatprep.subr.mxu0 0.0
    %1026 = vmatpush1.msra.mxu0 0.0
    %1027 = vmatprep.subr.mxu0 0.0
    %1028 = vmatpush1.msra.mxu0 0.0
    %1029 = vmatprep.subr.mxu0 0.0
    %1030 = vmatpush1.msra.mxu0 0.0
    %1031 = vmatprep.subr.mxu0 0.0
    %1032 = vmatpush1.msra.mxu0 0.0
    %1033 = vmatprep.subr.mxu0 0.0
    %1034 = vmatpush1.msra.mxu0 0.0
    %1035 = vmatprep.subr.mxu0 0.0
    %1036 = vmatpush1.msra.mxu0 0.0
    %1037 = vmatprep.mubr.f32.mxu0 0.0
    %1038 = vmatmul.mubr.f32.gmra.mrb[0].mxu0 %v967
    %v1039 = vpop.f32.mrb[0].mxu0
    %v1040 = vadd.f32 0.0, %v1039
    %v1041 = vpop.f32.mrb[0].mxu0
    %v1042 = vadd.f32 0.0, %v1041
    %1043 = vdwg.mxu0
    %1044 = vmatprep.subr.mxu0 %v383
    %1045 = vmatpush1.msra.mxu0 %v382
    %1046 = vmatprep.subr.mxu0 %v387
    %1047 = vmatpush1.msra.mxu0 %v386
    %1048 = vmatprep.subr.mxu0 %v391
    %1049 = vmatpush1.msra.mxu0 %v390
    %1050 = vmatprep.subr.mxu0 %v395
    %1051 = vmatpush1.msra.mxu0 %v394
    %1052 = vmatprep.subr.mxu0 %v399
    %1053 = vmatpush1.msra.mxu0 %v398
    %1054 = vmatprep.subr.mxu0 %v403
    %1055 = vmatpush1.msra.mxu0 %v402
    %1056 = vmatprep.subr.mxu0 %v407
    %1057 = vmatpush1.msra.mxu0 %v406
    %1058 = vmatprep.subr.mxu0 %v411
    %1059 = vmatpush1.msra.mxu0 %v410
    %1060 = vmatprep.subr.mxu0 %v415
    %1061 = vmatpush1.msra.mxu0 %v414
    %1062 = vmatprep.subr.mxu0 %v419
    %1063 = vmatpush1.msra.mxu0 %v418
    %1064 = vmatprep.subr.mxu0 %v423
    %1065 = vmatpush1.msra.mxu0 %v422
    %1066 = vmatprep.subr.mxu0 %v427
    %1067 = vmatpush1.msra.mxu0 %v426
    %1068 = vmatprep.subr.mxu0 %v431
    %1069 = vmatpush1.msra.mxu0 %v430
    %1070 = vmatprep.subr.mxu0 %v435
    %1071 = vmatpush1.msra.mxu0 %v434
    %1072 = vmatprep.subr.mxu0 %v439
    %1073 = vmatpush1.msra.mxu0 %v438
    %1074 = vmatprep.subr.mxu0 %v443
    %1075 = vmatpush1.msra.mxu0 %v442
    %1076 = vmatprep.subr.mxu0 0.0
    %1077 = vmatpush1.msra.mxu0 0.0
    %1078 = vmatprep.subr.mxu0 0.0
    %1079 = vmatpush1.msra.mxu0 0.0
    %1080 = vmatprep.subr.mxu0 0.0
    %1081 = vmatpush1.msra.mxu0 0.0
    %1082 = vmatprep.subr.mxu0 0.0
    %1083 = vmatpush1.msra.mxu0 0.0
    %1084 = vmatprep.subr.mxu0 0.0
    %1085 = vmatpush1.msra.mxu0 0.0
    %1086 = vmatprep.subr.mxu0 0.0
    %1087 = vmatpush1.msra.mxu0 0.0
    %1088 = vmatprep.subr.mxu0 0.0
    %1089 = vmatpush1.msra.mxu0 0.0
    %1090 = vmatprep.subr.mxu0 0.0
    %1091 = vmatpush1.msra.mxu0 0.0
    %1092 = vmatprep.subr.mxu0 0.0
    %1093 = vmatpush1.msra.mxu0 0.0
    %1094 = vmatprep.subr.mxu0 0.0
    %1095 = vmatpush1.msra.mxu0 0.0
    %1096 = vmatprep.subr.mxu0 0.0
    %1097 = vmatpush1.msra.mxu0 0.0
    %1098 = vmatprep.subr.mxu0 0.0
    %1099 = vmatpush1.msra.mxu0 0.0
    %1100 = vmatprep.subr.mxu0 0.0
    %1101 = vmatpush1.msra.mxu0 0.0
    %1102 = vmatprep.subr.mxu0 0.0
    %1103 = vmatpush1.msra.mxu0 0.0
    %1104 = vmatprep.subr.mxu0 0.0
    %1105 = vmatpush1.msra.mxu0 0.0
    %1106 = vmatprep.subr.mxu0 0.0
    %1107 = vmatpush1.msra.mxu0 0.0
    %1108 = vmatprep.mubr.f32.mxu0 0.0
    %1109 = vmatmul.mubr.f32.gmra.mrb[0].mxu0 %v967
    %v1110 = vpop.f32.mrb[0].mxu0
    %v1111 = vadd.f32 0.0, %v1110
    %v1112 = vpop.f32.mrb[0].mxu0
    %v1113 = vadd.f32 0.0, %v1112
    %1114 = vdwg.mxu0
    %v1115 = vadd.f32 %v969, %v1040
    %v1116 = vadd.f32 %v970, %v1042
    %v1117 = vadd.f32 %v971, %v1111
    %v1118 = vadd.f32 %v972, %v1113
    %v1119 = vxor.u32 %v1115, 2147483648
    %v1120 = vmul.f32 %v1119, 1.442695
    %v1121 = vpow.pop %v1120
    %v1122 = vadd.f32 %v1121, 1.0
    %v1123 = vrcp.pop %v1122
    %v1124 = vmul.f32 1.0, %v1123
    %v1125 = vxor.u32 %v1116, 2147483648
    %v1126 = vmul.f32 %v1125, 1.442695
    %v1127 = vpow.pop %v1126
    %v1128 = vadd.f32 %v1127, 1.0
    %v1129 = vrcp.pop %v1128
    %v1130 = vmul.f32 1.0, %v1129
    %v1131 = vtanh.pop %v1117
    %v1132 = vxor.u32 %v1118, 2147483648
    %v1133 = vmul.f32 %v1132, 1.442695
    %v1134 = vpow.pop %v1133
    %v1135 = vadd.f32 %v1134, 1.0
    %v1136 = vrcp.pop %v1135
    %v1137 = vmul.f32 1.0, %v1136
    %v1138 = vmul.f32 %v1130, %v965
    %v1139 = vmul.f32 %v1124, %v1131
    %v1140 = vadd.f32 %v1138, %v1139
    %v1141 = vtanh.pop %v1140
    %v1142 = vmul.f32 %v1137, %v1141
    %s1143 = scalar_lea.vmem [#allocation2], 128
    %v1144 = vld [vmem:[%s1143] sm:$0xff]
    %v1145 = vld [vmem:[%s1143 + $0x8] sm:$0xff]
    %v1146 = vld [vmem:[%s1143 + $0x10] sm:$0xff]
    %v1147 = vld [vmem:[%s1143 + $0x18] sm:$0xff]
    %1148 = vmatprep.subr.mxu0 %v381
    %1149 = vmatpush1.msra.mxu0 %v380
    %1150 = vmatprep.subr.mxu0 %v385
    %1151 = vmatpush1.msra.mxu0 %v384
    %1152 = vmatprep.subr.mxu0 %v389
    %1153 = vmatpush1.msra.mxu0 %v388
    %1154 = vmatprep.subr.mxu0 %v393
    %1155 = vmatpush1.msra.mxu0 %v392
    %1156 = vmatprep.subr.mxu0 %v397
    %1157 = vmatpush1.msra.mxu0 %v396
    %1158 = vmatprep.subr.mxu0 %v401
    %1159 = vmatpush1.msra.mxu0 %v400
    %1160 = vmatprep.subr.mxu0 %v405
    %1161 = vmatpush1.msra.mxu0 %v404
    %1162 = vmatprep.subr.mxu0 %v409
    %1163 = vmatpush1.msra.mxu0 %v408
    %1164 = vmatprep.subr.mxu0 %v413
    %1165 = vmatpush1.msra.mxu0 %v412
    %1166 = vmatprep.subr.mxu0 %v417
    %1167 = vmatpush1.msra.mxu0 %v416
    %1168 = vmatprep.subr.mxu0 %v421
    %1169 = vmatpush1.msra.mxu0 %v420
    %1170 = vmatprep.subr.mxu0 %v425
    %1171 = vmatpush1.msra.mxu0 %v424
    %1172 = vmatprep.subr.mxu0 %v429
    %1173 = vmatpush1.msra.mxu0 %v428
    %1174 = vmatprep.subr.mxu0 %v433
    %1175 = vmatpush1.msra.mxu0 %v432
    %1176 = vmatprep.subr.mxu0 %v437
    %1177 = vmatpush1.msra.mxu0 %v436
    %1178 = vmatprep.subr.mxu0 %v441
    %1179 = vmatpush1.msra.mxu0 %v440
    %1180 = vmatprep.subr.mxu0 0.0
    %1181 = vmatpush1.msra.mxu0 0.0
    %1182 = vmatprep.subr.mxu0 0.0
    %1183 = vmatpush1.msra.mxu0 0.0
    %1184 = vmatprep.subr.mxu0 0.0
    %1185 = vmatpush1.msra.mxu0 0.0
    %1186 = vmatprep.subr.mxu0 0.0
    %1187 = vmatpush1.msra.mxu0 0.0
    %1188 = vmatprep.subr.mxu0 0.0
    %1189 = vmatpush1.msra.mxu0 0.0
    %1190 = vmatprep.subr.mxu0 0.0
    %1191 = vmatpush1.msra.mxu0 0.0
    %1192 = vmatprep.subr.mxu0 0.0
    %1193 = vmatpush1.msra.mxu0 0.0
    %1194 = vmatprep.subr.mxu0 0.0
    %1195 = vmatpush1.msra.mxu0 0.0
    %1196 = vmatprep.subr.mxu0 0.0
    %1197 = vmatpush1.msra.mxu0 0.0
    %1198 = vmatprep.subr.mxu0 0.0
    %1199 = vmatpush1.msra.mxu0 0.0
    %1200 = vmatprep.subr.mxu0 0.0
    %1201 = vmatpush1.msra.mxu0 0.0
    %1202 = vmatprep.subr.mxu0 0.0
    %1203 = vmatpush1.msra.mxu0 0.0
    %1204 = vmatprep.subr.mxu0 0.0
    %1205 = vmatpush1.msra.mxu0 0.0
    %1206 = vmatprep.subr.mxu0 0.0
    %1207 = vmatpush1.msra.mxu0 0.0
    %1208 = vmatprep.subr.mxu0 0.0
    %1209 = vmatpush1.msra.mxu0 0.0
    %1210 = vmatprep.subr.mxu0 0.0
    %1211 = vmatpush1.msra.mxu0 0.0
    %1212 = vmatprep.mubr.f32.mxu0 0.0
    %1213 = vmatmul.mubr.f32.gmra.mrb[0].mxu0 %v1142
    %v1214 = vpop.f32.mrb[0].mxu0
    %v1215 = vadd.f32 0.0, %v1214
    %v1216 = vpop.f32.mrb[0].mxu0
    %v1217 = vadd.f32 0.0, %v1216
    %1218 = vdwg.mxu0
    %1219 = vmatprep.subr.mxu0 %v383
    %1220 = vmatpush1.msra.mxu0 %v382
    %1221 = vmatprep.subr.mxu0 %v387
    %1222 = vmatpush1.msra.mxu0 %v386
    %1223 = vmatprep.subr.mxu0 %v391
    %1224 = vmatpush1.msra.mxu0 %v390
    %1225 = vmatprep.subr.mxu0 %v395
    %1226 = vmatpush1.msra.mxu0 %v394
    %1227 = vmatprep.subr.mxu0 %v399
    %1228 = vmatpush1.msra.mxu0 %v398
    %1229 = vmatprep.subr.mxu0 %v403
    %1230 = vmatpush1.msra.mxu0 %v402
    %1231 = vmatprep.subr.mxu0 %v407
    %1232 = vmatpush1.msra.mxu0 %v406
    %1233 = vmatprep.subr.mxu0 %v411
    %1234 = vmatpush1.msra.mxu0 %v410
    %1235 = vmatprep.subr.mxu0 %v415
    %1236 = vmatpush1.msra.mxu0 %v414
    %1237 = vmatprep.subr.mxu0 %v419
    %1238 = vmatpush1.msra.mxu0 %v418
    %1239 = vmatprep.subr.mxu0 %v423
    %1240 = vmatpush1.msra.mxu0 %v422
    %1241 = vmatprep.subr.mxu0 %v427
    %1242 = vmatpush1.msra.mxu0 %v426
    %1243 = vmatprep.subr.mxu0 %v431
    %1244 = vmatpush1.msra.mxu0 %v430
    %1245 = vmatprep.subr.mxu0 %v435
    %1246 = vmatpush1.msra.mxu0 %v434
    %1247 = vmatprep.subr.mxu0 %v439
    %1248 = vmatpush1.msra.mxu0 %v438
    %1249 = vmatprep.subr.mxu0 %v443
    %1250 = vmatpush1.msra.mxu0 %v442
    %1251 = vmatprep.subr.mxu0 0.0
    %1252 = vmatpush1.msra.mxu0 0.0
    %1253 = vmatprep.subr.mxu0 0.0
    %1254 = vmatpush1.msra.mxu0 0.0
    %1255 = vmatprep.subr.mxu0 0.0
    %1256 = vmatpush1.msra.mxu0 0.0
    %1257 = vmatprep.subr.mxu0 0.0
    %1258 = vmatpush1.msra.mxu0 0.0
    %1259 = vmatprep.subr.mxu0 0.0
    %1260 = vmatpush1.msra.mxu0 0.0
    %1261 = vmatprep.subr.mxu0 0.0
    %1262 = vmatpush1.msra.mxu0 0.0
    %1263 = vmatprep.subr.mxu0 0.0
    %1264 = vmatpush1.msra.mxu0 0.0
    %1265 = vmatprep.subr.mxu0 0.0
    %1266 = vmatpush1.msra.mxu0 0.0
    %1267 = vmatprep.subr.mxu0 0.0
    %1268 = vmatpush1.msra.mxu0 0.0
    %1269 = vmatprep.subr.mxu0 0.0
    %1270 = vmatpush1.msra.mxu0 0.0
    %1271 = vmatprep.subr.mxu0 0.0
    %1272 = vmatpush1.msra.mxu0 0.0
    %1273 = vmatprep.subr.mxu0 0.0
    %1274 = vmatpush1.msra.mxu0 0.0
    %1275 = vmatprep.subr.mxu0 0.0
    %1276 = vmatpush1.msra.mxu0 0.0
    %1277 = vmatprep.subr.mxu0 0.0
    %1278 = vmatpush1.msra.mxu0 0.0
    %1279 = vmatprep.subr.mxu0 0.0
    %1280 = vmatpush1.msra.mxu0 0.0
    %1281 = vmatprep.subr.mxu0 0.0
    %1282 = vmatpush1.msra.mxu0 0.0
    %1283 = vmatprep.mubr.f32.mxu0 0.0
    %1284 = vmatmul.mubr.f32.gmra.mrb[0].mxu0 %v1142
    %v1285 = vpop.f32.mrb[0].mxu0
    %v1286 = vadd.f32 0.0, %v1285
    %v1287 = vpop.f32.mrb[0].mxu0
    %v1288 = vadd.f32 0.0, %v1287
    %1289 = vdwg.mxu0
    %v1290 = vadd.f32 %v1144, %v1215
    %v1291 = vadd.f32 %v1145, %v1217
    %v1292 = vadd.f32 %v1146, %v1286
    %v1293 = vadd.f32 %v1147, %v1288
    %v1294 = vxor.u32 %v1290, 2147483648
    %v1295 = vmul.f32 %v1294, 1.442695
    %v1296 = vpow.pop %v1295
    %v1297 = vadd.f32 %v1296, 1.0
    %v1298 = vrcp.pop %v1297
    %v1299 = vmul.f32 1.0, %v1298
    %v1300 = vxor.u32 %v1291, 2147483648
    %v1301 = vmul.f32 %v1300, 1.442695
    %v1302 = vpow.pop %v1301
    %v1303 = vadd.f32 %v1302, 1.0
    %v1304 = vrcp.pop %v1303
    %v1305 = vmul.f32 1.0, %v1304
    %v1306 = vtanh.pop %v1292
    %v1307 = vxor.u32 %v1293, 2147483648
    %v1308 = vmul.f32 %v1307, 1.442695
    %v1309 = vpow.pop %v1308
    %v1310 = vadd.f32 %v1309, 1.0
    %v1311 = vrcp.pop %v1310
    %v1312 = vmul.f32 1.0, %v1311
    %v1313 = vmul.f32 %v1305, %v1140
    %v1314 = vmul.f32 %v1299, %v1306
    %v1315 = vadd.f32 %v1313, %v1314
    %v1316 = vtanh.pop %v1315
    %v1317 = vmul.f32 %v1312, %v1316
    %s1318 = scalar_lea.vmem [#allocation2], 160
    %v1319 = vld [vmem:[%s1318] sm:$0xff]
    %v1320 = vld [vmem:[%s1318 + $0x8] sm:$0xff]
    %v1321 = vld [vmem:[%s1318 + $0x10] sm:$0xff]
    %v1322 = vld [vmem:[%s1318 + $0x18] sm:$0xff]
    %1323 = vmatprep.subr.mxu0 %v381
    %1324 = vmatpush1.msra.mxu0 %v380
    %1325 = vmatprep.subr.mxu0 %v385
    %1326 = vmatpush1.msra.mxu0 %v384
    %1327 = vmatprep.subr.mxu0 %v389
    %1328 = vmatpush1.msra.mxu0 %v388
    %1329 = vmatprep.subr.mxu0 %v393
    %1330 = vmatpush1.msra.mxu0 %v392
    %1331 = vmatprep.subr.mxu0 %v397
    %1332 = vmatpush1.msra.mxu0 %v396
    %1333 = vmatprep.subr.mxu0 %v401
    %1334 = vmatpush1.msra.mxu0 %v400
    %1335 = vmatprep.subr.mxu0 %v405
    %1336 = vmatpush1.msra.mxu0 %v404
    %1337 = vmatprep.subr.mxu0 %v409
    %1338 = vmatpush1.msra.mxu0 %v408
    %1339 = vmatprep.subr.mxu0 %v413
    %1340 = vmatpush1.msra.mxu0 %v412
    %1341 = vmatprep.subr.mxu0 %v417
    %1342 = vmatpush1.msra.mxu0 %v416
    %1343 = vmatprep.subr.mxu0 %v421
    %1344 = vmatpush1.msra.mxu0 %v420
    %1345 = vmatprep.subr.mxu0 %v425
    %1346 = vmatpush1.msra.mxu0 %v424
    %1347 = vmatprep.subr.mxu0 %v429
    %1348 = vmatpush1.msra.mxu0 %v428
    %1349 = vmatprep.subr.mxu0 %v433
    %1350 = vmatpush1.msra.mxu0 %v432
    %1351 = vmatprep.subr.mxu0 %v437
    %1352 = vmatpush1.msra.mxu0 %v436
    %1353 = vmatprep.subr.mxu0 %v441
    %1354 = vmatpush1.msra.mxu0 %v440
    %1355 = vmatprep.subr.mxu0 0.0
    %1356 = vmatpush1.msra.mxu0 0.0
    %1357 = vmatprep.subr.mxu0 0.0
    %1358 = vmatpush1.msra.mxu0 0.0
    %1359 = vmatprep.subr.mxu0 0.0
    %1360 = vmatpush1.msra.mxu0 0.0
    %1361 = vmatprep.subr.mxu0 0.0
    %1362 = vmatpush1.msra.mxu0 0.0
    %1363 = vmatprep.subr.mxu0 0.0
    %1364 = vmatpush1.msra.mxu0 0.0
    %1365 = vmatprep.subr.mxu0 0.0
    %1366 = vmatpush1.msra.mxu0 0.0
    %1367 = vmatprep.subr.mxu0 0.0
    %1368 = vmatpush1.msra.mxu0 0.0
    %1369 = vmatprep.subr.mxu0 0.0
    %1370 = vmatpush1.msra.mxu0 0.0
    %1371 = vmatprep.subr.mxu0 0.0
    %1372 = vmatpush1.msra.mxu0 0.0
    %1373 = vmatprep.subr.mxu0 0.0
    %1374 = vmatpush1.msra.mxu0 0.0
    %1375 = vmatprep.subr.mxu0 0.0
    %1376 = vmatpush1.msra.mxu0 0.0
    %1377 = vmatprep.subr.mxu0 0.0
    %1378 = vmatpush1.msra.mxu0 0.0
    %1379 = vmatprep.subr.mxu0 0.0
    %1380 = vmatpush1.msra.mxu0 0.0
    %1381 = vmatprep.subr.mxu0 0.0
    %1382 = vmatpush1.msra.mxu0 0.0
    %1383 = vmatprep.subr.mxu0 0.0
    %1384 = vmatpush1.msra.mxu0 0.0
    %1385 = vmatprep.subr.mxu0 0.0
    %1386 = vmatpush1.msra.mxu0 0.0
    %1387 = vmatprep.mubr.f32.mxu0 0.0
    %1388 = vmatmul.mubr.f32.gmra.mrb[0].mxu0 %v1317
    %v1389 = vpop.f32.mrb[0].mxu0
    %v1390 = vadd.f32 0.0, %v1389
    %v1391 = vpop.f32.mrb[0].mxu0
    %v1392 = vadd.f32 0.0, %v1391
    %1393 = vdwg.mxu0
    %1394 = vmatprep.subr.mxu0 %v383
    %1395 = vmatpush1.msra.mxu0 %v382
    %1396 = vmatprep.subr.mxu0 %v387
    %1397 = vmatpush1.msra.mxu0 %v386
    %1398 = vmatprep.subr.mxu0 %v391
    %1399 = vmatpush1.msra.mxu0 %v390
    %1400 = vmatprep.subr.mxu0 %v395
    %1401 = vmatpush1.msra.mxu0 %v394
    %1402 = vmatprep.subr.mxu0 %v399
    %1403 = vmatpush1.msra.mxu0 %v398
    %1404 = vmatprep.subr.mxu0 %v403
    %1405 = vmatpush1.msra.mxu0 %v402
    %1406 = vmatprep.subr.mxu0 %v407
    %1407 = vmatpush1.msra.mxu0 %v406
    %1408 = vmatprep.subr.mxu0 %v411
    %1409 = vmatpush1.msra.mxu0 %v410
    %1410 = vmatprep.subr.mxu0 %v415
    %1411 = vmatpush1.msra.mxu0 %v414
    %1412 = vmatprep.subr.mxu0 %v419
    %1413 = vmatpush1.msra.mxu0 %v418
    %1414 = vmatprep.subr.mxu0 %v423
    %1415 = vmatpush1.msra.mxu0 %v422
    %1416 = vmatprep.subr.mxu0 %v427
    %1417 = vmatpush1.msra.mxu0 %v426
    %1418 = vmatprep.subr.mxu0 %v431
    %1419 = vmatpush1.msra.mxu0 %v430
    %1420 = vmatprep.subr.mxu0 %v435
    %1421 = vmatpush1.msra.mxu0 %v434
    %1422 = vmatprep.subr.mxu0 %v439
    %1423 = vmatpush1.msra.mxu0 %v438
    %1424 = vmatprep.subr.mxu0 %v443
    %1425 = vmatpush1.msra.mxu0 %v442
    %1426 = vmatprep.subr.mxu0 0.0
    %1427 = vmatpush1.msra.mxu0 0.0
    %1428 = vmatprep.subr.mxu0 0.0
    %1429 = vmatpush1.msra.mxu0 0.0
    %1430 = vmatprep.subr.mxu0 0.0
    %1431 = vmatpush1.msra.mxu0 0.0
    %1432 = vmatprep.subr.mxu0 0.0
    %1433 = vmatpush1.msra.mxu0 0.0
    %1434 = vmatprep.subr.mxu0 0.0
    %1435 = vmatpush1.msra.mxu0 0.0
    %1436 = vmatprep.subr.mxu0 0.0
    %1437 = vmatpush1.msra.mxu0 0.0
    %1438 = vmatprep.subr.mxu0 0.0
    %1439 = vmatpush1.msra.mxu0 0.0
    %1440 = vmatprep.subr.mxu0 0.0
    %1441 = vmatpush1.msra.mxu0 0.0
    %1442 = vmatprep.subr.mxu0 0.0
    %1443 = vmatpush1.msra.mxu0 0.0
    %1444 = vmatprep.subr.mxu0 0.0
    %1445 = vmatpush1.msra.mxu0 0.0
    %1446 = vmatprep.subr.mxu0 0.0
    %1447 = vmatpush1.msra.mxu0 0.0
    %1448 = vmatprep.subr.mxu0 0.0
    %1449 = vmatpush1.msra.mxu0 0.0
    %1450 = vmatprep.subr.mxu0 0.0
    %1451 = vmatpush1.msra.mxu0 0.0
    %1452 = vmatprep.subr.mxu0 0.0
    %1453 = vmatpush1.msra.mxu0 0.0
    %1454 = vmatprep.subr.mxu0 0.0
    %1455 = vmatpush1.msra.mxu0 0.0
    %1456 = vmatprep.subr.mxu0 0.0
    %1457 = vmatpush1.msra.mxu0 0.0
    %1458 = vmatprep.mubr.f32.mxu0 0.0
    %1459 = vmatmul.mubr.f32.gmra.mrb[0].mxu0 %v1317
    %v1460 = vpop.f32.mrb[0].mxu0
    %v1461 = vadd.f32 0.0, %v1460
    %v1462 = vpop.f32.mrb[0].mxu0
    %v1463 = vadd.f32 0.0, %v1462
    %1464 = vdwg.mxu0
    %v1465 = vadd.f32 %v1319, %v1390
    %v1466 = vadd.f32 %v1320, %v1392
    %v1467 = vadd.f32 %v1321, %v1461
    %v1468 = vadd.f32 %v1322, %v1463
    %v1469 = vxor.u32 %v1465, 2147483648
    %v1470 = vmul.f32 %v1469, 1.442695
    %v1471 = vpow.pop %v1470
    %v1472 = vadd.f32 %v1471, 1.0
    %v1473 = vrcp.pop %v1472
    %v1474 = vmul.f32 1.0, %v1473
    %v1475 = vxor.u32 %v1466, 2147483648
    %v1476 = vmul.f32 %v1475, 1.442695
    %v1477 = vpow.pop %v1476
    %v1478 = vadd.f32 %v1477, 1.0
    %v1479 = vrcp.pop %v1478
    %v1480 = vmul.f32 1.0, %v1479
    %v1481 = vtanh.pop %v1467
    %v1482 = vxor.u32 %v1468, 2147483648
    %v1483 = vmul.f32 %v1482, 1.442695
    %v1484 = vpow.pop %v1483
    %v1485 = vadd.f32 %v1484, 1.0
    %v1486 = vrcp.pop %v1485
    %v1487 = vmul.f32 1.0, %v1486
    %v1488 = vmul.f32 %v1480, %v1315
    %v1489 = vmul.f32 %v1474, %v1481
    %v1490 = vadd.f32 %v1488, %v1489
    %v1491 = vtanh.pop %v1490
    %v1492 = vmul.f32 %v1487, %v1491
    %s1493 = scalar_lea.vmem [#allocation2], 192
    %v1494 = vld [vmem:[%s1493] sm:$0xff]
    %v1495 = vld [vmem:[%s1493 + $0x8] sm:$0xff]
    %v1496 = vld [vmem:[%s1493 + $0x10] sm:$0xff]
    %v1497 = vld [vmem:[%s1493 + $0x18] sm:$0xff]
    %1498 = vmatprep.subr.mxu0 %v381
    %1499 = vmatpush1.msra.mxu0 %v380
    %1500 = vmatprep.subr.mxu0 %v385
    %1501 = vmatpush1.msra.mxu0 %v384
    %1502 = vmatprep.subr.mxu0 %v389
    %1503 = vmatpush1.msra.mxu0 %v388
    %1504 = vmatprep.subr.mxu0 %v393
    %1505 = vmatpush1.msra.mxu0 %v392
    %1506 = vmatprep.subr.mxu0 %v397
    %1507 = vmatpush1.msra.mxu0 %v396
    %1508 = vmatprep.subr.mxu0 %v401
    %1509 = vmatpush1.msra.mxu0 %v400
    %1510 = vmatprep.subr.mxu0 %v405
    %1511 = vmatpush1.msra.mxu0 %v404
    %1512 = vmatprep.subr.mxu0 %v409
    %1513 = vmatpush1.msra.mxu0 %v408
    %1514 = vmatprep.subr.mxu0 %v413
    %1515 = vmatpush1.msra.mxu0 %v412
    %1516 = vmatprep.subr.mxu0 %v417
    %1517 = vmatpush1.msra.mxu0 %v416
    %1518 = vmatprep.subr.mxu0 %v421
    %1519 = vmatpush1.msra.mxu0 %v420
    %1520 = vmatprep.subr.mxu0 %v425
    %1521 = vmatpush1.msra.mxu0 %v424
    %1522 = vmatprep.subr.mxu0 %v429
    %1523 = vmatpush1.msra.mxu0 %v428
    %1524 = vmatprep.subr.mxu0 %v433
    %1525 = vmatpush1.msra.mxu0 %v432
    %1526 = vmatprep.subr.mxu0 %v437
    %1527 = vmatpush1.msra.mxu0 %v436
    %1528 = vmatprep.subr.mxu0 %v441
    %1529 = vmatpush1.msra.mxu0 %v440
    %1530 = vmatprep.subr.mxu0 0.0
    %1531 = vmatpush1.msra.mxu0 0.0
    %1532 = vmatprep.subr.mxu0 0.0
    %1533 = vmatpush1.msra.mxu0 0.0
    %1534 = vmatprep.subr.mxu0 0.0
    %1535 = vmatpush1.msra.mxu0 0.0
    %1536 = vmatprep.subr.mxu0 0.0
    %1537 = vmatpush1.msra.mxu0 0.0
    %1538 = vmatprep.subr.mxu0 0.0
    %1539 = vmatpush1.msra.mxu0 0.0
    %1540 = vmatprep.subr.mxu0 0.0
    %1541 = vmatpush1.msra.mxu0 0.0
    %1542 = vmatprep.subr.mxu0 0.0
    %1543 = vmatpush1.msra.mxu0 0.0
    %1544 = vmatprep.subr.mxu0 0.0
    %1545 = vmatpush1.msra.mxu0 0.0
    %1546 = vmatprep.subr.mxu0 0.0
    %1547 = vmatpush1.msra.mxu0 0.0
    %1548 = vmatprep.subr.mxu0 0.0
    %1549 = vmatpush1.msra.mxu0 0.0
    %1550 = vmatprep.subr.mxu0 0.0
    %1551 = vmatpush1.msra.mxu0 0.0
    %1552 = vmatprep.subr.mxu0 0.0
    %1553 = vmatpush1.msra.mxu0 0.0
    %1554 = vmatprep.subr.mxu0 0.0
    %1555 = vmatpush1.msra.mxu0 0.0
    %1556 = vmatprep.subr.mxu0 0.0
    %1557 = vmatpush1.msra.mxu0 0.0
    %1558 = vmatprep.subr.mxu0 0.0
    %1559 = vmatpush1.msra.mxu0 0.0
    %1560 = vmatprep.subr.mxu0 0.0
    %1561 = vmatpush1.msra.mxu0 0.0
    %1562 = vmatprep.mubr.f32.mxu0 0.0
    %1563 = vmatmul.mubr.f32.gmra.mrb[0].mxu0 %v1492
    %v1564 = vpop.f32.mrb[0].mxu0
    %v1565 = vadd.f32 0.0, %v1564
    %v1566 = vpop.f32.mrb[0].mxu0
    %v1567 = vadd.f32 0.0, %v1566
    %1568 = vdwg.mxu0
    %1569 = vmatprep.subr.mxu0 %v383
    %1570 = vmatpush1.msra.mxu0 %v382
    %1571 = vmatprep.subr.mxu0 %v387
    %1572 = vmatpush1.msra.mxu0 %v386
    %1573 = vmatprep.subr.mxu0 %v391
    %1574 = vmatpush1.msra.mxu0 %v390
    %1575 = vmatprep.subr.mxu0 %v395
    %1576 = vmatpush1.msra.mxu0 %v394
    %1577 = vmatprep.subr.mxu0 %v399
    %1578 = vmatpush1.msra.mxu0 %v398
    %1579 = vmatprep.subr.mxu0 %v403
    %1580 = vmatpush1.msra.mxu0 %v402
    %1581 = vmatprep.subr.mxu0 %v407
    %1582 = vmatpush1.msra.mxu0 %v406
    %1583 = vmatprep.subr.mxu0 %v411
    %1584 = vmatpush1.msra.mxu0 %v410
    %1585 = vmatprep.subr.mxu0 %v415
    %1586 = vmatpush1.msra.mxu0 %v414
    %1587 = vmatprep.subr.mxu0 %v419
    %1588 = vmatpush1.msra.mxu0 %v418
    %1589 = vmatprep.subr.mxu0 %v423
    %1590 = vmatpush1.msra.mxu0 %v422
    %1591 = vmatprep.subr.mxu0 %v427
    %1592 = vmatpush1.msra.mxu0 %v426
    %1593 = vmatprep.subr.mxu0 %v431
    %1594 = vmatpush1.msra.mxu0 %v430
    %1595 = vmatprep.subr.mxu0 %v435
    %1596 = vmatpush1.msra.mxu0 %v434
    %1597 = vmatprep.subr.mxu0 %v439
    %1598 = vmatpush1.msra.mxu0 %v438
    %1599 = vmatprep.subr.mxu0 %v443
    %1600 = vmatpush1.msra.mxu0 %v442
    %1601 = vmatprep.subr.mxu0 0.0
    %1602 = vmatpush1.msra.mxu0 0.0
    %1603 = vmatprep.subr.mxu0 0.0
    %1604 = vmatpush1.msra.mxu0 0.0
    %1605 = vmatprep.subr.mxu0 0.0
    %1606 = vmatpush1.msra.mxu0 0.0
    %1607 = vmatprep.subr.mxu0 0.0
    %1608 = vmatpush1.msra.mxu0 0.0
    %1609 = vmatprep.subr.mxu0 0.0
    %1610 = vmatpush1.msra.mxu0 0.0
    %1611 = vmatprep.subr.mxu0 0.0
    %1612 = vmatpush1.msra.mxu0 0.0
    %1613 = vmatprep.subr.mxu0 0.0
    %1614 = vmatpush1.msra.mxu0 0.0
    %1615 = vmatprep.subr.mxu0 0.0
    %1616 = vmatpush1.msra.mxu0 0.0
    %1617 = vmatprep.subr.mxu0 0.0
    %1618 = vmatpush1.msra.mxu0 0.0
    %1619 = vmatprep.subr.mxu0 0.0
    %1620 = vmatpush1.msra.mxu0 0.0
    %1621 = vmatprep.subr.mxu0 0.0
    %1622 = vmatpush1.msra.mxu0 0.0
    %1623 = vmatprep.subr.mxu0 0.0
    %1624 = vmatpush1.msra.mxu0 0.0
    %1625 = vmatprep.subr.mxu0 0.0
    %1626 = vmatpush1.msra.mxu0 0.0
    %1627 = vmatprep.subr.mxu0 0.0
    %1628 = vmatpush1.msra.mxu0 0.0
    %1629 = vmatprep.subr.mxu0 0.0
    %1630 = vmatpush1.msra.mxu0 0.0
    %1631 = vmatprep.subr.mxu0 0.0
    %1632 = vmatpush1.msra.mxu0 0.0
    %1633 = vmatprep.mubr.f32.mxu0 0.0
    %1634 = vmatmul.mubr.f32.gmra.mrb[0].mxu0 %v1492
    %v1635 = vpop.f32.mrb[0].mxu0
    %v1636 = vadd.f32 0.0, %v1635
    %v1637 = vpop.f32.mrb[0].mxu0
    %v1638 = vadd.f32 0.0, %v1637
    %1639 = vdwg.mxu0
    %v1640 = vadd.f32 %v1494, %v1565
    %v1641 = vadd.f32 %v1495, %v1567
    %v1642 = vadd.f32 %v1496, %v1636
    %v1643 = vadd.f32 %v1497, %v1638
    %v1644 = vxor.u32 %v1640, 2147483648
    %v1645 = vmul.f32 %v1644, 1.442695
    %v1646 = vpow.pop %v1645
    %v1647 = vadd.f32 %v1646, 1.0
    %v1648 = vrcp.pop %v1647
    %v1649 = vmul.f32 1.0, %v1648
    %v1650 = vxor.u32 %v1641, 2147483648
    %v1651 = vmul.f32 %v1650, 1.442695
    %v1652 = vpow.pop %v1651
    %v1653 = vadd.f32 %v1652, 1.0
    %v1654 = vrcp.pop %v1653
    %v1655 = vmul.f32 1.0, %v1654
    %v1656 = vtanh.pop %v1642
    %v1657 = vxor.u32 %v1643, 2147483648
    %v1658 = vmul.f32 %v1657, 1.442695
    %v1659 = vpow.pop %v1658
    %v1660 = vadd.f32 %v1659, 1.0
    %v1661 = vrcp.pop %v1660
    %v1662 = vmul.f32 1.0, %v1661
    %v1663 = vmul.f32 %v1655, %v1490
    %v1664 = vmul.f32 %v1649, %v1656
    %v1665 = vadd.f32 %v1663, %v1664
    %v1666 = vtanh.pop %v1665
    %v1667 = vmul.f32 %v1662, %v1666
    %s1668 = scalar_lea.vmem [#allocation2], 224
    %v1669 = vld [vmem:[%s1668] sm:$0xff]
    %v1670 = vld [vmem:[%s1668 + $0x8] sm:$0xff]
    %v1671 = vld [vmem:[%s1668 + $0x10] sm:$0xff]
    %v1672 = vld [vmem:[%s1668 + $0x18] sm:$0xff]
    %1673 = vmatprep.subr.mxu0 %v381
    %1674 = vmatpush1.msra.mxu0 %v380
    %1675 = vmatprep.subr.mxu0 %v385
    %1676 = vmatpush1.msra.mxu0 %v384
    %1677 = vmatprep.subr.mxu0 %v389
    %1678 = vmatpush1.msra.mxu0 %v388
    %1679 = vmatprep.subr.mxu0 %v393
    %1680 = vmatpush1.msra.mxu0 %v392
    %1681 = vmatprep.subr.mxu0 %v397
    %1682 = vmatpush1.msra.mxu0 %v396
    %1683 = vmatprep.subr.mxu0 %v401
    %1684 = vmatpush1.msra.mxu0 %v400
    %1685 = vmatprep.subr.mxu0 %v405
    %1686 = vmatpush1.msra.mxu0 %v404
    %1687 = vmatprep.subr.mxu0 %v409
    %1688 = vmatpush1.msra.mxu0 %v408
    %1689 = vmatprep.subr.mxu0 %v413
    %1690 = vmatpush1.msra.mxu0 %v412
    %1691 = vmatprep.subr.mxu0 %v417
    %1692 = vmatpush1.msra.mxu0 %v416
    %1693 = vmatprep.subr.mxu0 %v421
    %1694 = vmatpush1.msra.mxu0 %v420
    %1695 = vmatprep.subr.mxu0 %v425
    %1696 = vmatpush1.msra.mxu0 %v424
    %1697 = vmatprep.subr.mxu0 %v429
    %1698 = vmatpush1.msra.mxu0 %v428
    %1699 = vmatprep.subr.mxu0 %v433
    %1700 = vmatpush1.msra.mxu0 %v432
    %1701 = vmatprep.subr.mxu0 %v437
    %1702 = vmatpush1.msra.mxu0 %v436
    %1703 = vmatprep.subr.mxu0 %v441
    %1704 = vmatpush1.msra.mxu0 %v440
    %1705 = vmatprep.subr.mxu0 0.0
    %1706 = vmatpush1.msra.mxu0 0.0
    %1707 = vmatprep.subr.mxu0 0.0
    %1708 = vmatpush1.msra.mxu0 0.0
    %1709 = vmatprep.subr.mxu0 0.0
    %1710 = vmatpush1.msra.mxu0 0.0
    %1711 = vmatprep.subr.mxu0 0.0
    %1712 = vmatpush1.msra.mxu0 0.0
    %1713 = vmatprep.subr.mxu0 0.0
    %1714 = vmatpush1.msra.mxu0 0.0
    %1715 = vmatprep.subr.mxu0 0.0
    %1716 = vmatpush1.msra.mxu0 0.0
    %1717 = vmatprep.subr.mxu0 0.0
    %1718 = vmatpush1.msra.mxu0 0.0
    %1719 = vmatprep.subr.mxu0 0.0
    %1720 = vmatpush1.msra.mxu0 0.0
    %1721 = vmatprep.subr.mxu0 0.0
    %1722 = vmatpush1.msra.mxu0 0.0
    %1723 = vmatprep.subr.mxu0 0.0
    %1724 = vmatpush1.msra.mxu0 0.0
    %1725 = vmatprep.subr.mxu0 0.0
    %1726 = vmatpush1.msra.mxu0 0.0
    %1727 = vmatprep.subr.mxu0 0.0
    %1728 = vmatpush1.msra.mxu0 0.0
    %1729 = vmatprep.subr.mxu0 0.0
    %1730 = vmatpush1.msra.mxu0 0.0
    %1731 = vmatprep.subr.mxu0 0.0
    %1732 = vmatpush1.msra.mxu0 0.0
    %1733 = vmatprep.subr.mxu0 0.0
    %1734 = vmatpush1.msra.mxu0 0.0
    %1735 = vmatprep.subr.mxu0 0.0
    %1736 = vmatpush1.msra.mxu0 0.0
    %1737 = vmatprep.mubr.f32.mxu0 0.0
    %1738 = vmatmul.mubr.f32.gmra.mrb[0].mxu0 %v1667
    %v1739 = vpop.f32.mrb[0].mxu0
    %v1740 = vadd.f32 0.0, %v1739
    %v1741 = vpop.f32.mrb[0].mxu0
    %v1742 = vadd.f32 0.0, %v1741
    %1743 = vdwg.mxu0
    %1744 = vmatprep.subr.mxu0 %v383
    %1745 = vmatpush1.msra.mxu0 %v382
    %1746 = vmatprep.subr.mxu0 %v387
    %1747 = vmatpush1.msra.mxu0 %v386
    %1748 = vmatprep.subr.mxu0 %v391
    %1749 = vmatpush1.msra.mxu0 %v390
    %1750 = vmatprep.subr.mxu0 %v395
    %1751 = vmatpush1.msra.mxu0 %v394
    %1752 = vmatprep.subr.mxu0 %v399
    %1753 = vmatpush1.msra.mxu0 %v398
    %1754 = vmatprep.subr.mxu0 %v403
    %1755 = vmatpush1.msra.mxu0 %v402
    %1756 = vmatprep.subr.mxu0 %v407
    %1757 = vmatpush1.msra.mxu0 %v406
    %1758 = vmatprep.subr.mxu0 %v411
    %1759 = vmatpush1.msra.mxu0 %v410
    %1760 = vmatprep.subr.mxu0 %v415
    %1761 = vmatpush1.msra.mxu0 %v414
    %1762 = vmatprep.subr.mxu0 %v419
    %1763 = vmatpush1.msra.mxu0 %v418
    %1764 = vmatprep.subr.mxu0 %v423
    %1765 = vmatpush1.msra.mxu0 %v422
    %1766 = vmatprep.subr.mxu0 %v427
    %1767 = vmatpush1.msra.mxu0 %v426
    %1768 = vmatprep.subr.mxu0 %v431
    %1769 = vmatpush1.msra.mxu0 %v430
    %1770 = vmatprep.subr.mxu0 %v435
    %1771 = vmatpush1.msra.mxu0 %v434
    %1772 = vmatprep.subr.mxu0 %v439
    %1773 = vmatpush1.msra.mxu0 %v438
    %1774 = vmatprep.subr.mxu0 %v443
    %1775 = vmatpush1.msra.mxu0 %v442
    %1776 = vmatprep.subr.mxu0 0.0
    %1777 = vmatpush1.msra.mxu0 0.0
    %1778 = vmatprep.subr.mxu0 0.0
    %1779 = vmatpush1.msra.mxu0 0.0
    %1780 = vmatprep.subr.mxu0 0.0
    %1781 = vmatpush1.msra.mxu0 0.0
    %1782 = vmatprep.subr.mxu0 0.0
    %1783 = vmatpush1.msra.mxu0 0.0
    %1784 = vmatprep.subr.mxu0 0.0
    %1785 = vmatpush1.msra.mxu0 0.0
    %1786 = vmatprep.subr.mxu0 0.0
    %1787 = vmatpush1.msra.mxu0 0.0
    %1788 = vmatprep.subr.mxu0 0.0
    %1789 = vmatpush1.msra.mxu0 0.0
    %1790 = vmatprep.subr.mxu0 0.0
    %1791 = vmatpush1.msra.mxu0 0.0
    %1792 = vmatprep.subr.mxu0 0.0
    %1793 = vmatpush1.msra.mxu0 0.0
    %1794 = vmatprep.subr.mxu0 0.0
    %1795 = vmatpush1.msra.mxu0 0.0
    %1796 = vmatprep.subr.mxu0 0.0
    %1797 = vmatpush1.msra.mxu0 0.0
    %1798 = vmatprep.subr.mxu0 0.0
    %1799 = vmatpush1.msra.mxu0 0.0
    %1800 = vmatprep.subr.mxu0 0.0
    %1801 = vmatpush1.msra.mxu0 0.0
    %1802 = vmatprep.subr.mxu0 0.0
    %1803 = vmatpush1.msra.mxu0 0.0
    %1804 = vmatprep.subr.mxu0 0.0
    %1805 = vmatpush1.msra.mxu0 0.0
    %1806 = vmatprep.subr.mxu0 0.0
    %1807 = vmatpush1.msra.mxu0 0.0
    %1808 = vmatprep.mubr.f32.mxu0 0.0
    %1809 = vmatmul.mubr.f32.gmra.mrb[0].mxu0 %v1667
    %v1810 = vpop.f32.mrb[0].mxu0
    %v1811 = vadd.f32 0.0, %v1810
    %v1812 = vpop.f32.mrb[0].mxu0
    %v1813 = vadd.f32 0.0, %v1812
    %1814 = vdwg.mxu0
    %v1815 = vadd.f32 %v1669, %v1740
    %v1816 = vadd.f32 %v1670, %v1742
    %v1817 = vadd.f32 %v1671, %v1811
    %v1818 = vadd.f32 %v1672, %v1813
    %v1819 = vxor.u32 %v1815, 2147483648
    %v1820 = vmul.f32 %v1819, 1.442695
    %v1821 = vpow.pop %v1820
    %v1822 = vadd.f32 %v1821, 1.0
    %v1823 = vrcp.pop %v1822
    %v1824 = vmul.f32 1.0, %v1823
    %v1825 = vxor.u32 %v1816, 2147483648
    %v1826 = vmul.f32 %v1825, 1.442695
    %v1827 = vpow.pop %v1826
    %v1828 = vadd.f32 %v1827, 1.0
    %v1829 = vrcp.pop %v1828
    %v1830 = vmul.f32 1.0, %v1829
    %v1831 = vtanh.pop %v1817
    %v1832 = vxor.u32 %v1818, 2147483648
    %v1833 = vmul.f32 %v1832, 1.442695
    %v1834 = vpow.pop %v1833
    %v1835 = vadd.f32 %v1834, 1.0
    %v1836 = vrcp.pop %v1835
    %v1837 = vmul.f32 1.0, %v1836
    %v1838 = vmul.f32 %v1830, %v1665
    %v1839 = vmul.f32 %v1824, %v1831
    %v1840 = vadd.f32 %v1838, %v1839
    %v1841 = vtanh.pop %v1840
    %v1842 = vmul.f32 %v1837, %v1841
    %v1843 = vld [vmem:[#allocation6] sm:$0xff]
    %v1844 = vld [vmem:[#allocation6 + $0x8] sm:$0xff]
    %v1845 = vld [vmem:[#allocation6 + $0x10] sm:$0xff]
    %v1846 = vld [vmem:[#allocation6 + $0x18] sm:$0xff]
    %v1847 = vld [vmem:[#allocation6 + $0x20] sm:$0xff]
    %v1848 = vld [vmem:[#allocation6 + $0x28] sm:$0xff]
    %v1849 = vld [vmem:[#allocation6 + $0x30] sm:$0xff]
    %v1850 = vld [vmem:[#allocation6 + $0x38] sm:$0xff]
    %v1851 = vld [vmem:[#allocation6 + $0x40] sm:$0xff]
    %v1852 = vld [vmem:[#allocation6 + $0x48] sm:$0xff]
    %v1853 = vld [vmem:[#allocation6 + $0x50] sm:$0xff]
    %v1854 = vld [vmem:[#allocation6 + $0x58] sm:$0xff]
    %v1855 = vld [vmem:[#allocation6 + $0x60] sm:$0xff]
    %v1856 = vld [vmem:[#allocation6 + $0x68] sm:$0xff]
    %v1857 = vld [vmem:[#allocation6 + $0x70] sm:$0xff]
    %v1858 = vld [vmem:[#allocation6 + $0x78] sm:$0xff]
    %v1859 = vld [vmem:[%s5] sm:$0x1]
    %v1861 = vlaneseq
    %v1862 = vshrl.u32 %v1861, 7
    %v1863 = vsub.s32 0, %v1862
    %v1864 = vrot.slane %v1859, %v1863
    %1866 = vmatprep.subr.mxu0 0.0
    %1867 = vmatpush1.msra.mxu0 %v1843
    %1868 = vmatprep.subr.mxu0 0.0
    %1869 = vmatpush1.msra.mxu0 %v1844
    %1870 = vmatprep.subr.mxu0 0.0
    %1871 = vmatpush1.msra.mxu0 %v1845
    %1872 = vmatprep.subr.mxu0 0.0
    %1873 = vmatpush1.msra.mxu0 %v1846
    %1874 = vmatprep.subr.mxu0 0.0
    %1875 = vmatpush1.msra.mxu0 %v1847
    %1876 = vmatprep.subr.mxu0 0.0
    %1877 = vmatpush1.msra.mxu0 %v1848
    %1878 = vmatprep.subr.mxu0 0.0
    %1879 = vmatpush1.msra.mxu0 %v1849
    %1880 = vmatprep.subr.mxu0 0.0
    %1881 = vmatpush1.msra.mxu0 %v1850
    %1882 = vmatprep.subr.mxu0 0.0
    %1883 = vmatpush1.msra.mxu0 %v1851
    %1884 = vmatprep.subr.mxu0 0.0
    %1885 = vmatpush1.msra.mxu0 %v1852
    %1886 = vmatprep.subr.mxu0 0.0
    %1887 = vmatpush1.msra.mxu0 %v1853
    %1888 = vmatprep.subr.mxu0 0.0
    %1889 = vmatpush1.msra.mxu0 %v1854
    %1890 = vmatprep.subr.mxu0 0.0
    %1891 = vmatpush1.msra.mxu0 %v1855
    %1892 = vmatprep.subr.mxu0 0.0
    %1893 = vmatpush1.msra.mxu0 %v1856
    %1894 = vmatprep.subr.mxu0 0.0
    %1895 = vmatpush1.msra.mxu0 %v1857
    %1896 = vmatprep.subr.mxu0 0.0
    %1897 = vmatpush1.msra.mxu0 %v1858
    %1898 = vmatprep.subr.mxu0 0.0
    %1899 = vmatpush1.msra.mxu0 0.0
    %1900 = vmatprep.subr.mxu0 0.0
    %1901 = vmatpush1.msra.mxu0 0.0
    %1902 = vmatprep.subr.mxu0 0.0
    %1903 = vmatpush1.msra.mxu0 0.0
    %1904 = vmatprep.subr.mxu0 0.0
    %1905 = vmatpush1.msra.mxu0 0.0
    %1906 = vmatprep.subr.mxu0 0.0
    %1907 = vmatpush1.msra.mxu0 0.0
    %1908 = vmatprep.subr.mxu0 0.0
    %1909 = vmatpush1.msra.mxu0 0.0
    %1910 = vmatprep.subr.mxu0 0.0
    %1911 = vmatpush1.msra.mxu0 0.0
    %1912 = vmatprep.subr.mxu0 0.0
    %1913 = vmatpush1.msra.mxu0 0.0
    %1914 = vmatprep.subr.mxu0 0.0
    %1915 = vmatpush1.msra.mxu0 0.0
    %1916 = vmatprep.subr.mxu0 0.0
    %1917 = vmatpush1.msra.mxu0 0.0
    %1918 = vmatprep.subr.mxu0 0.0
    %1919 = vmatpush1.msra.mxu0 0.0
    %1920 = vmatprep.subr.mxu0 0.0
    %1921 = vmatpush1.msra.mxu0 0.0
    %1922 = vmatprep.subr.mxu0 0.0
    %1923 = vmatpush1.msra.mxu0 0.0
    %1924 = vmatprep.subr.mxu0 0.0
    %1925 = vmatpush1.msra.mxu0 0.0
    %1926 = vmatprep.subr.mxu0 0.0
    %1927 = vmatpush1.msra.mxu0 0.0
    %1928 = vmatprep.subr.mxu0 0.0
    %1929 = vmatpush1.msra.mxu0 0.0
    %1930 = vmatprep.mubr.f32.mxu0 0.0
    %1931 = vmatmul.mubr.f32.gmra.mrb[0].mxu0 %v1842
    %v1932 = vpop.f32.mrb[0].mxu0
    %v1933 = vadd.f32 %v1864, %v1932
    %v1934 = vpop.f32.mrb[0].mxu0
    %1935 = vdwg.mxu0
    %1936 = vst [vmem:[#allocation8] sm:$0xff] %v1933
    // Predicated region
    $region34: #{tpu_custom_call.1} parent=1 // pred_check
      _
    $region35: #{tpu_custom_call.1} parent=1 // pred_check_branch
      %1938 = sbr.rel (0) target = $region37
    $region36: #{tpu_custom_call.1} parent=1 // pred_region
      %s1940 = ssub.s32 128, 128
      %1941 = vsyncadd [#allocation5], %s1940
      %s1943 = sshll.u32 [#allocation8], 4
      %s1944 = int_to_ptr.vmem [resolvable:$true] %s1943
      %1946 = dma.vmem_to_hbm [thread:$0]  %s1944, 128, %s6, [#allocation5]
    $region37: #{tpu_custom_call.1} parent=1 // pred_fallthru
      _
    // Predicated region
    $region38: #{tpu_custom_call.1} parent=1 // pred_check
      _
    $region39: #{tpu_custom_call.1} parent=1 // pred_check_branch
      %1948 = sbr.rel (0) target = $region41
    $region40: #{tpu_custom_call.1} parent=1 // pred_region
      %1949 = dma.done [#allocation5], 128
    $region41: #{tpu_custom_call.1} parent=1 // pred_fallthru
      _
    %1950 = vsyncpa [#allocation4], 1
    %1951 = vsyncpa [#allocation7], 1
    %1952 = vsyncpa [#allocation5], 1

</llo_original>
